<compile_context>
chip_gen: v7x
topology: tpu7x:2x2x1
jax: 0.10.0
libtpu: 0.0.40
codegen_flags: <defaults>
</compile_context>

<pallas_src>
import functools

import jax
import jax.numpy as jnp
from jax.experimental import pallas as pl
from jax.experimental.pallas import tpu as pltpu


def _conv3x3_kernel(x_ref, w_ref, o_ref, *, width):
    # x_ref: (nB, C, HW)   flattened NCHW input block (unpadded)
    # w_ref: (9*Co, C)     folded weight, row order (dh, dw, co)
    # o_ref: (nB, Co, HW)  flattened NCHW output block
    nB = x_ref.shape[0]
    HW = x_ref.shape[2]
    Co = o_ref.shape[1]
    W = width

    w_all = w_ref[...]  # (9*Co, C)

    # Per-lane image column index (to mask the pad=1 borders along W).
    col = jax.lax.broadcasted_iota(jnp.int32, (1, HW), 1)
    w_idx = col % W

    def shift_lanes(r, d):
        # t[:, s] = r[:, s + d], zero-filled outside [0, HW).
        if d == 0:
            return r
        if abs(d) >= HW:
            return jnp.zeros((Co, HW), r.dtype)
        z = jnp.zeros((Co, abs(d)), r.dtype)
        if d > 0:
            return jnp.concatenate([r[:, d:], z], axis=1)
        return jnp.concatenate([z, r[:, :d]], axis=1)

    for b in range(nB):  # static unroll; nB is small
        x = x_ref[b]  # (C, HW)
        # Single wide matmul: every tap's (Co, C) weight stacked along M.
        r = jnp.dot(
            w_all, x,
            preferred_element_type=jnp.float32,
            precision=jax.lax.Precision.HIGHEST,
        )  # (9*Co, HW)

        acc = jnp.zeros((Co, HW), jnp.float32)
        for dh in range(3):
            oh = dh - 1
            for dw in range(3):
                ow = dw - 1
                k = dh * 3 + dw
                tap = r[k * Co:(k + 1) * Co, :]              # (Co, HW)
                contrib = shift_lanes(tap, oh * W + ow)      # h-border handled by zero fill
                if ow != 0:                                  # w-border handled by mask
                    valid = jnp.logical_and(w_idx + ow >= 0, w_idx + ow < W)
                    contrib = jnp.where(valid, contrib, 0.0)
                acc = acc + contrib
        o_ref[b] = acc.astype(o_ref.dtype)


def shrinkage_channels_forward(x_nchw, weight_oihw):
    """x_nchw: (N, 256, H, W); weight_oihw: (Co, 256, 3, 3). Returns (N, Co, H, W)."""
    N, C, H, W = x_nchw.shape
    Co = weight_oihw.shape[0]
    HW = H * W

    # Free reshape (contiguous trailing dims): NCHW -> (N, C, H*W).
    x2d = x_nchw.reshape(N, C, HW)
    # Fold all 9 taps into the M axis of one matmul:
    #   w_folded[(dh*3+dw)*Co + co, c] = weight[co, c, dh, dw]
    w_folded = jnp.transpose(weight_oihw, (2, 3, 0, 1)).reshape(9 * Co, C)

    # Block several images per grid step (amortizes ~0.35us/step pipeline overhead
    # for small feature maps) while keeping the double-buffered input block small.
    hw_lanes = max(128, ((HW + 127) // 128) * 128)  # lane padding in VMEM
    per_image_bytes = C * hw_lanes * x_nchw.dtype.itemsize
    nB = 1
    for cand in range(N, 0, -1):
        if N % cand == 0 and 2 * cand * per_image_bytes <= 8 * 1024 * 1024:
            nB = cand
            break
    # TODO(synk): for very large feature maps (per-image block > ~8 MiB, e.g. H=W>~90
    # on v7x's 64 MiB VMEM) add halo'd spatial tiling over H (second parallel grid axis).

    kernel = functools.partial(_conv3x3_kernel, width=W)

    out2d = pl.pallas_call(
        kernel,
        out_shape=jax.ShapeDtypeStruct((N, Co, HW), x_nchw.dtype),
        grid_spec=pltpu.PrefetchScalarGridSpec(
            num_scalar_prefetch=0,
            grid=(N // nB,),
            in_specs=[
                pl.BlockSpec((nB, C, HW), lambda i: (i, 0, 0)),
                pl.BlockSpec((9 * Co, C), lambda i: (0, 0)),
            ],
            out_specs=pl.BlockSpec((nB, Co, HW), lambda i: (i, 0, 0)),
        ),
        compiler_params=pltpu.CompilerParams(
            dimension_semantics=("parallel",),
            vmem_limit_bytes=32 * 1024 * 1024,
        ),
    )(x2d, w_folded)

    # Free reshape back to NCHW.
    return out2d.reshape(N, Co, H, W)


if __name__ == "__main__":
    key = jax.random.PRNGKey(0)
    k_x, k_w = jax.random.split(key)

    # Small shapes consistent with the module: in_channels fixed at 256.
    N, C, H, W = 2, 256, 8, 8
    Co = 3

    x = jax.random.normal(k_x, (N, C, H, W), dtype=jnp.float32)
    # Deterministic synthetic weight (shape matches nn.Conv2d(256, 3, 3, bias=False)).
    weight = jax.random.normal(k_w, (Co, C, 3, 3), dtype=jnp.float32) * 0.02

    fwd = jax.jit(shrinkage_channels_forward)
    out = jax.block_until_ready(fwd(x, weight))

    # Reference check against XLA conv (NCHW, OIHW).
    ref = jax.lax.conv_general_dilated(
        x, weight, window_strides=(1, 1), padding=((1, 1), (1, 1)),
        dimension_numbers=("NCHW", "OIHW", "NCHW"),
        precision=jax.lax.Precision.HIGHEST,
    )
    assert out.shape == (N, Co, H, W)
    assert jnp.allclose(out, ref, atol=1e-3, rtol=1e-3)

    print("KERNEL_OK")
</pallas_src>

<mosaic_0001>
module attributes {stable_mosaic.version = 11 : i64} {
  func.func @_conv3x3_kernel(%arg0: i32, %arg1: memref<2x256x64xf32, #tpu.memory_space<vmem>>, %arg2: memref<27x256xf32, #tpu.memory_space<vmem>>, %arg3: memref<2x3x64xf32, #tpu.memory_space<vmem>>) attributes {dimension_semantics = [#tpu.dimension_semantics<parallel>], iteration_bounds = array<i64: 1>, scalar_prefetch = 0 : i64, scratch_operands = 0 : i64, tpu.core_type = #tpu.core_type<tc>, window_params = [{transform_indices = @transform_0, window_bounds = array<i64: 2, 256, 64>}, {pipeline_mode = #tpu.pipeline_mode<synchronous>, transform_indices = @transform_1, window_bounds = array<i64: 27, 256>}, {transform_indices = @transform_2, window_bounds = array<i64: 2, 3, 64>}]} {
    %c0 = arith.constant 0 : index
    %c0_0 = arith.constant 0 : index
    %0 = vector.load %arg2[%c0, %c0_0] : memref<27x256xf32, #tpu.memory_space<vmem>>, vector<27x256xf32>
    %1 = tpu.iota {dimensions = array<i32: 1>} : vector<1x64xi32>
    %c8_i32 = arith.constant 8 : i32
    %c0_i32 = arith.constant 0 : i32
    %2 = arith.cmpi eq, %c8_i32, %c0_i32 : i32
    %c1_i32 = arith.constant 1 : i32
    %3 = arith.select %2, %c1_i32, %c8_i32 : i32
    %4 = vector.broadcast %3 : i32 to vector<1x64xi32>
    %5 = arith.remsi %1, %4 : vector<1x64xi32>
    %c0_i32_1 = arith.constant 0 : i32
    %6 = vector.broadcast %c0_i32_1 : i32 to vector<1x64xi32>
    %7 = arith.cmpi ne, %5, %6 : vector<1x64xi32>
    %c0_i32_2 = arith.constant 0 : i32
    %8 = vector.broadcast %c0_i32_2 : i32 to vector<1x64xi32>
    %9 = arith.cmpi slt, %5, %8 : vector<1x64xi32>
    %c0_i32_3 = arith.constant 0 : i32
    %10 = arith.cmpi slt, %3, %c0_i32_3 : i32
    %11 = vector.broadcast %10 : i1 to vector<1x64xi1>
    %12 = vector.broadcast %11 : vector<1x64xi1> to vector<1x64xi1>
    %13 = arith.xori %9, %12 : vector<1x64xi1>
    %14 = arith.andi %13, %7 : vector<1x64xi1>
    %15 = vector.broadcast %3 : i32 to vector<1x64xi32>
    %16 = arith.addi %5, %15 : vector<1x64xi32>
    %17 = arith.select %14, %16, %5 : vector<1x64xi1>, vector<1x64xi32>
    %c0_4 = arith.constant 0 : index
    %c0_5 = arith.constant 0 : index
    %c0_6 = arith.constant 0 : index
    %18 = vector.load %arg1[%c0_4, %c0_5, %c0_6] : memref<2x256x64xf32, #tpu.memory_space<vmem>>, vector<1x256x64xf32>
    %19 = vector.shape_cast %18 : vector<1x256x64xf32> to vector<256x64xf32>
    %cst = arith.constant dense<0.000000e+00> : vector<27x64xf32>
    %20 = tpu.matmul %0, %19, %cst {dimension_numbers = #tpu.dot_dimension_numbers<[1], [0], [0], [1], [0, 0, 1, 1], [], []>, precision = #tpu.contract_precision<fp32>} : vector<27x256xf32>, vector<256x64xf32>, vector<27x64xf32> -> vector<27x64xf32>
    %cst_7 = arith.constant 0.000000e+00 : f32
    %21 = vector.broadcast %cst_7 : f32 to vector<3x64xf32>
    %22 = vector.extract_strided_slice %20 {offsets = [0, 0], sizes = [3, 64], strides = [1, 1]} : vector<27x64xf32> to vector<3x64xf32>
    %cst_8 = arith.constant 0.000000e+00 : f32
    %23 = vector.broadcast %cst_8 : f32 to vector<3x9xf32>
    %24 = vector.extract_strided_slice %22 {offsets = [0, 0], sizes = [3, 55], strides = [1, 1]} : vector<3x64xf32> to vector<3x55xf32>
    %25 = tpu.concatenate %23, %24 in 1 : vector<3x9xf32>, vector<3x55xf32> -> vector<3x64xf32>
    %c-1_i32 = arith.constant -1 : i32
    %26 = vector.broadcast %c-1_i32 : i32 to vector<1x64xi32>
    %27 = arith.addi %17, %26 : vector<1x64xi32>
    %c0_i32_9 = arith.constant 0 : i32
    %28 = vector.broadcast %c0_i32_9 : i32 to vector<1x64xi32>
    %29 = arith.cmpi sge, %27, %28 : vector<1x64xi32>
    %c-1_i32_10 = arith.constant -1 : i32
    %30 = vector.broadcast %c-1_i32_10 : i32 to vector<1x64xi32>
    %31 = arith.addi %17, %30 : vector<1x64xi32>
    %c8_i32_11 = arith.constant 8 : i32
    %32 = vector.broadcast %c8_i32_11 : i32 to vector<1x64xi32>
    %33 = arith.cmpi slt, %31, %32 : vector<1x64xi32>
    %34 = arith.andi %29, %33 : vector<1x64xi1>
    %cst_12 = arith.constant 0.000000e+00 : f32
    %35 = vector.shape_cast %34 : vector<1x64xi1> to vector<1x64xi1>
    %36 = vector.broadcast %35 : vector<1x64xi1> to vector<3x64xi1>
    %37 = vector.broadcast %cst_12 : f32 to vector<3x64xf32>
    %38 = arith.select %36, %25, %37 : vector<3x64xi1>, vector<3x64xf32>
    %39 = arith.addf %21, %38 : vector<3x64xf32>
    %40 = vector.extract_strided_slice %20 {offsets = [3, 0], sizes = [3, 64], strides = [1, 1]} : vector<27x64xf32> to vector<3x64xf32>
    %cst_13 = arith.constant 0.000000e+00 : f32
    %41 = vector.broadcast %cst_13 : f32 to vector<3x8xf32>
    %42 = vector.extract_strided_slice %40 {offsets = [0, 0], sizes = [3, 56], strides = [1, 1]} : vector<3x64xf32> to vector<3x56xf32>
    %43 = tpu.concatenate %41, %42 in 1 : vector<3x8xf32>, vector<3x56xf32> -> vector<3x64xf32>
    %44 = arith.addf %39, %43 : vector<3x64xf32>
    %45 = vector.extract_strided_slice %20 {offsets = [6, 0], sizes = [3, 64], strides = [1, 1]} : vector<27x64xf32> to vector<3x64xf32>
    %cst_14 = arith.constant 0.000000e+00 : f32
    %46 = vector.broadcast %cst_14 : f32 to vector<3x7xf32>
    %47 = vector.extract_strided_slice %45 {offsets = [0, 0], sizes = [3, 57], strides = [1, 1]} : vector<3x64xf32> to vector<3x57xf32>
    %48 = tpu.concatenate %46, %47 in 1 : vector<3x7xf32>, vector<3x57xf32> -> vector<3x64xf32>
    %c1_i32_15 = arith.constant 1 : i32
    %49 = vector.broadcast %c1_i32_15 : i32 to vector<1x64xi32>
    %50 = arith.addi %17, %49 : vector<1x64xi32>
    %c0_i32_16 = arith.constant 0 : i32
    %51 = vector.broadcast %c0_i32_16 : i32 to vector<1x64xi32>
    %52 = arith.cmpi sge, %50, %51 : vector<1x64xi32>
    %c1_i32_17 = arith.constant 1 : i32
    %53 = vector.broadcast %c1_i32_17 : i32 to vector<1x64xi32>
    %54 = arith.addi %17, %53 : vector<1x64xi32>
    %c8_i32_18 = arith.constant 8 : i32
    %55 = vector.broadcast %c8_i32_18 : i32 to vector<1x64xi32>
    %56 = arith.cmpi slt, %54, %55 : vector<1x64xi32>
    %57 = arith.andi %52, %56 : vector<1x64xi1>
    %cst_19 = arith.constant 0.000000e+00 : f32
    %58 = vector.shape_cast %57 : vector<1x64xi1> to vector<1x64xi1>
    %59 = vector.broadcast %58 : vector<1x64xi1> to vector<3x64xi1>
    %60 = vector.broadcast %cst_19 : f32 to vector<3x64xf32>
    %61 = arith.select %59, %48, %60 : vector<3x64xi1>, vector<3x64xf32>
    %62 = arith.addf %44, %61 : vector<3x64xf32>
    %63 = vector.extract_strided_slice %20 {offsets = [9, 0], sizes = [3, 64], strides = [1, 1]} : vector<27x64xf32> to vector<3x64xf32>
    %cst_20 = arith.constant 0.000000e+00 : f32
    %64 = vector.broadcast %cst_20 : f32 to vector<3x1xf32>
    %65 = vector.extract_strided_slice %63 {offsets = [0, 0], sizes = [3, 63], strides = [1, 1]} : vector<3x64xf32> to vector<3x63xf32>
    %66 = tpu.concatenate %64, %65 in 1 : vector<3x1xf32>, vector<3x63xf32> -> vector<3x64xf32>
    %c-1_i32_21 = arith.constant -1 : i32
    %67 = vector.broadcast %c-1_i32_21 : i32 to vector<1x64xi32>
    %68 = arith.addi %17, %67 : vector<1x64xi32>
    %c0_i32_22 = arith.constant 0 : i32
    %69 = vector.broadcast %c0_i32_22 : i32 to vector<1x64xi32>
    %70 = arith.cmpi sge, %68, %69 : vector<1x64xi32>
    %c-1_i32_23 = arith.constant -1 : i32
    %71 = vector.broadcast %c-1_i32_23 : i32 to vector<1x64xi32>
    %72 = arith.addi %17, %71 : vector<1x64xi32>
    %c8_i32_24 = arith.constant 8 : i32
    %73 = vector.broadcast %c8_i32_24 : i32 to vector<1x64xi32>
    %74 = arith.cmpi slt, %72, %73 : vector<1x64xi32>
    %75 = arith.andi %70, %74 : vector<1x64xi1>
    %cst_25 = arith.constant 0.000000e+00 : f32
    %76 = vector.shape_cast %75 : vector<1x64xi1> to vector<1x64xi1>
    %77 = vector.broadcast %76 : vector<1x64xi1> to vector<3x64xi1>
    %78 = vector.broadcast %cst_25 : f32 to vector<3x64xf32>
    %79 = arith.select %77, %66, %78 : vector<3x64xi1>, vector<3x64xf32>
    %80 = arith.addf %62, %79 : vector<3x64xf32>
    %81 = vector.extract_strided_slice %20 {offsets = [12, 0], sizes = [3, 64], strides = [1, 1]} : vector<27x64xf32> to vector<3x64xf32>
    %82 = arith.addf %80, %81 : vector<3x64xf32>
    %83 = vector.extract_strided_slice %20 {offsets = [15, 0], sizes = [3, 64], strides = [1, 1]} : vector<27x64xf32> to vector<3x64xf32>
    %cst_26 = arith.constant 0.000000e+00 : f32
    %84 = vector.broadcast %cst_26 : f32 to vector<3x1xf32>
    %85 = vector.extract_strided_slice %83 {offsets = [0, 1], sizes = [3, 63], strides = [1, 1]} : vector<3x64xf32> to vector<3x63xf32>
    %86 = tpu.concatenate %85, %84 in 1 : vector<3x63xf32>, vector<3x1xf32> -> vector<3x64xf32>
    %c1_i32_27 = arith.constant 1 : i32
    %87 = vector.broadcast %c1_i32_27 : i32 to vector<1x64xi32>
    %88 = arith.addi %17, %87 : vector<1x64xi32>
    %c0_i32_28 = arith.constant 0 : i32
    %89 = vector.broadcast %c0_i32_28 : i32 to vector<1x64xi32>
    %90 = arith.cmpi sge, %88, %89 : vector<1x64xi32>
    %c1_i32_29 = arith.constant 1 : i32
    %91 = vector.broadcast %c1_i32_29 : i32 to vector<1x64xi32>
    %92 = arith.addi %17, %91 : vector<1x64xi32>
    %c8_i32_30 = arith.constant 8 : i32
    %93 = vector.broadcast %c8_i32_30 : i32 to vector<1x64xi32>
    %94 = arith.cmpi slt, %92, %93 : vector<1x64xi32>
    %95 = arith.andi %90, %94 : vector<1x64xi1>
    %cst_31 = arith.constant 0.000000e+00 : f32
    %96 = vector.shape_cast %95 : vector<1x64xi1> to vector<1x64xi1>
    %97 = vector.broadcast %96 : vector<1x64xi1> to vector<3x64xi1>
    %98 = vector.broadcast %cst_31 : f32 to vector<3x64xf32>
    %99 = arith.select %97, %86, %98 : vector<3x64xi1>, vector<3x64xf32>
    %100 = arith.addf %82, %99 : vector<3x64xf32>
    %101 = vector.extract_strided_slice %20 {offsets = [18, 0], sizes = [3, 64], strides = [1, 1]} : vector<27x64xf32> to vector<3x64xf32>
    %cst_32 = arith.constant 0.000000e+00 : f32
    %102 = vector.broadcast %cst_32 : f32 to vector<3x7xf32>
    %103 = vector.extract_strided_slice %101 {offsets = [0, 7], sizes = [3, 57], strides = [1, 1]} : vector<3x64xf32> to vector<3x57xf32>
    %104 = tpu.concatenate %103, %102 in 1 : vector<3x57xf32>, vector<3x7xf32> -> vector<3x64xf32>
    %c-1_i32_33 = arith.constant -1 : i32
    %105 = vector.broadcast %c-1_i32_33 : i32 to vector<1x64xi32>
    %106 = arith.addi %17, %105 : vector<1x64xi32>
    %c0_i32_34 = arith.constant 0 : i32
    %107 = vector.broadcast %c0_i32_34 : i32 to vector<1x64xi32>
    %108 = arith.cmpi sge, %106, %107 : vector<1x64xi32>
    %c-1_i32_35 = arith.constant -1 : i32
    %109 = vector.broadcast %c-1_i32_35 : i32 to vector<1x64xi32>
    %110 = arith.addi %17, %109 : vector<1x64xi32>
    %c8_i32_36 = arith.constant 8 : i32
    %111 = vector.broadcast %c8_i32_36 : i32 to vector<1x64xi32>
    %112 = arith.cmpi slt, %110, %111 : vector<1x64xi32>
    %113 = arith.andi %108, %112 : vector<1x64xi1>
    %cst_37 = arith.constant 0.000000e+00 : f32
    %114 = vector.shape_cast %113 : vector<1x64xi1> to vector<1x64xi1>
    %115 = vector.broadcast %114 : vector<1x64xi1> to vector<3x64xi1>
    %116 = vector.broadcast %cst_37 : f32 to vector<3x64xf32>
    %117 = arith.select %115, %104, %116 : vector<3x64xi1>, vector<3x64xf32>
    %118 = arith.addf %100, %117 : vector<3x64xf32>
    %119 = vector.extract_strided_slice %20 {offsets = [21, 0], sizes = [3, 64], strides = [1, 1]} : vector<27x64xf32> to vector<3x64xf32>
    %cst_38 = arith.constant 0.000000e+00 : f32
    %120 = vector.broadcast %cst_38 : f32 to vector<3x8xf32>
    %121 = vector.extract_strided_slice %119 {offsets = [0, 8], sizes = [3, 56], strides = [1, 1]} : vector<3x64xf32> to vector<3x56xf32>
    %122 = tpu.concatenate %121, %120 in 1 : vector<3x56xf32>, vector<3x8xf32> -> vector<3x64xf32>
    %123 = arith.addf %118, %122 : vector<3x64xf32>
    %124 = vector.extract_strided_slice %20 {offsets = [24, 0], sizes = [3, 64], strides = [1, 1]} : vector<27x64xf32> to vector<3x64xf32>
    %cst_39 = arith.constant 0.000000e+00 : f32
    %125 = vector.broadcast %cst_39 : f32 to vector<3x9xf32>
    %126 = vector.extract_strided_slice %124 {offsets = [0, 9], sizes = [3, 55], strides = [1, 1]} : vector<3x64xf32> to vector<3x55xf32>
    %127 = tpu.concatenate %126, %125 in 1 : vector<3x55xf32>, vector<3x9xf32> -> vector<3x64xf32>
    %c1_i32_40 = arith.constant 1 : i32
    %128 = vector.broadcast %c1_i32_40 : i32 to vector<1x64xi32>
    %129 = arith.addi %17, %128 : vector<1x64xi32>
    %c0_i32_41 = arith.constant 0 : i32
    %130 = vector.broadcast %c0_i32_41 : i32 to vector<1x64xi32>
    %131 = arith.cmpi sge, %129, %130 : vector<1x64xi32>
    %c1_i32_42 = arith.constant 1 : i32
    %132 = vector.broadcast %c1_i32_42 : i32 to vector<1x64xi32>
    %133 = arith.addi %17, %132 : vector<1x64xi32>
    %c8_i32_43 = arith.constant 8 : i32
    %134 = vector.broadcast %c8_i32_43 : i32 to vector<1x64xi32>
    %135 = arith.cmpi slt, %133, %134 : vector<1x64xi32>
    %136 = arith.andi %131, %135 : vector<1x64xi1>
    %cst_44 = arith.constant 0.000000e+00 : f32
    %137 = vector.shape_cast %136 : vector<1x64xi1> to vector<1x64xi1>
    %138 = vector.broadcast %137 : vector<1x64xi1> to vector<3x64xi1>
    %139 = vector.broadcast %cst_44 : f32 to vector<3x64xf32>
    %140 = arith.select %138, %127, %139 : vector<3x64xi1>, vector<3x64xf32>
    %141 = arith.addf %123, %140 : vector<3x64xf32>
    %c0_45 = arith.constant 0 : index
    %c0_46 = arith.constant 0 : index
    %c0_47 = arith.constant 0 : index
    %142 = vector.load %arg3[%c0_45, %c0_46, %c0_47] : memref<2x3x64xf32, #tpu.memory_space<vmem>>, vector<1x3x64xf32>
    %143 = vector.shape_cast %142 : vector<1x3x64xf32> to vector<3x64xf32>
    %144 = vector.shape_cast %141 : vector<3x64xf32> to vector<1x3x64xf32>
    tpu.vector_store %arg3[%c0_45, %c0_46, %c0_47], %144 {strides = array<i32>} : memref<2x3x64xf32, #tpu.memory_space<vmem>>, vector<1x3x64xf32>,
    %c1 = arith.constant 1 : index
    %c0_48 = arith.constant 0 : index
    %c0_49 = arith.constant 0 : index
    %145 = vector.load %arg1[%c1, %c0_48, %c0_49] : memref<2x256x64xf32, #tpu.memory_space<vmem>>, vector<1x256x64xf32>
    %146 = vector.shape_cast %145 : vector<1x256x64xf32> to vector<256x64xf32>
    %cst_50 = arith.constant dense<0.000000e+00> : vector<27x64xf32>
    %147 = tpu.matmul %0, %146, %cst_50 {dimension_numbers = #tpu.dot_dimension_numbers<[1], [0], [0], [1], [0, 0, 1, 1], [], []>, precision = #tpu.contract_precision<fp32>} : vector<27x256xf32>, vector<256x64xf32>, vector<27x64xf32> -> vector<27x64xf32>
    %cst_51 = arith.constant 0.000000e+00 : f32
    %148 = vector.broadcast %cst_51 : f32 to vector<3x64xf32>
    %149 = vector.extract_strided_slice %147 {offsets = [0, 0], sizes = [3, 64], strides = [1, 1]} : vector<27x64xf32> to vector<3x64xf32>
    %cst_52 = arith.constant 0.000000e+00 : f32
    %150 = vector.broadcast %cst_52 : f32 to vector<3x9xf32>
    %151 = vector.extract_strided_slice %149 {offsets = [0, 0], sizes = [3, 55], strides = [1, 1]} : vector<3x64xf32> to vector<3x55xf32>
    %152 = tpu.concatenate %150, %151 in 1 : vector<3x9xf32>, vector<3x55xf32> -> vector<3x64xf32>
    %c-1_i32_53 = arith.constant -1 : i32
    %153 = vector.broadcast %c-1_i32_53 : i32 to vector<1x64xi32>
    %154 = arith.addi %17, %153 : vector<1x64xi32>
    %c0_i32_54 = arith.constant 0 : i32
    %155 = vector.broadcast %c0_i32_54 : i32 to vector<1x64xi32>
    %156 = arith.cmpi sge, %154, %155 : vector<1x64xi32>
    %c-1_i32_55 = arith.constant -1 : i32
    %157 = vector.broadcast %c-1_i32_55 : i32 to vector<1x64xi32>
    %158 = arith.addi %17, %157 : vector<1x64xi32>
    %c8_i32_56 = arith.constant 8 : i32
    %159 = vector.broadcast %c8_i32_56 : i32 to vector<1x64xi32>
    %160 = arith.cmpi slt, %158, %159 : vector<1x64xi32>
    %161 = arith.andi %156, %160 : vector<1x64xi1>
    %cst_57 = arith.constant 0.000000e+00 : f32
    %162 = vector.shape_cast %161 : vector<1x64xi1> to vector<1x64xi1>
    %163 = vector.broadcast %162 : vector<1x64xi1> to vector<3x64xi1>
    %164 = vector.broadcast %cst_57 : f32 to vector<3x64xf32>
    %165 = arith.select %163, %152, %164 : vector<3x64xi1>, vector<3x64xf32>
    %166 = arith.addf %148, %165 : vector<3x64xf32>
    %167 = vector.extract_strided_slice %147 {offsets = [3, 0], sizes = [3, 64], strides = [1, 1]} : vector<27x64xf32> to vector<3x64xf32>
    %cst_58 = arith.constant 0.000000e+00 : f32
    %168 = vector.broadcast %cst_58 : f32 to vector<3x8xf32>
    %169 = vector.extract_strided_slice %167 {offsets = [0, 0], sizes = [3, 56], strides = [1, 1]} : vector<3x64xf32> to vector<3x56xf32>
    %170 = tpu.concatenate %168, %169 in 1 : vector<3x8xf32>, vector<3x56xf32> -> vector<3x64xf32>
    %171 = arith.addf %166, %170 : vector<3x64xf32>
    %172 = vector.extract_strided_slice %147 {offsets = [6, 0], sizes = [3, 64], strides = [1, 1]} : vector<27x64xf32> to vector<3x64xf32>
    %cst_59 = arith.constant 0.000000e+00 : f32
    %173 = vector.broadcast %cst_59 : f32 to vector<3x7xf32>
    %174 = vector.extract_strided_slice %172 {offsets = [0, 0], sizes = [3, 57], strides = [1, 1]} : vector<3x64xf32> to vector<3x57xf32>
    %175 = tpu.concatenate %173, %174 in 1 : vector<3x7xf32>, vector<3x57xf32> -> vector<3x64xf32>
    %c1_i32_60 = arith.constant 1 : i32
    %176 = vector.broadcast %c1_i32_60 : i32 to vector<1x64xi32>
    %177 = arith.addi %17, %176 : vector<1x64xi32>
    %c0_i32_61 = arith.constant 0 : i32
    %178 = vector.broadcast %c0_i32_61 : i32 to vector<1x64xi32>
    %179 = arith.cmpi sge, %177, %178 : vector<1x64xi32>
    %c1_i32_62 = arith.constant 1 : i32
    %180 = vector.broadcast %c1_i32_62 : i32 to vector<1x64xi32>
    %181 = arith.addi %17, %180 : vector<1x64xi32>
    %c8_i32_63 = arith.constant 8 : i32
    %182 = vector.broadcast %c8_i32_63 : i32 to vector<1x64xi32>
    %183 = arith.cmpi slt, %181, %182 : vector<1x64xi32>
    %184 = arith.andi %179, %183 : vector<1x64xi1>
    %cst_64 = arith.constant 0.000000e+00 : f32
    %185 = vector.shape_cast %184 : vector<1x64xi1> to vector<1x64xi1>
    %186 = vector.broadcast %185 : vector<1x64xi1> to vector<3x64xi1>
    %187 = vector.broadcast %cst_64 : f32 to vector<3x64xf32>
    %188 = arith.select %186, %175, %187 : vector<3x64xi1>, vector<3x64xf32>
    %189 = arith.addf %171, %188 : vector<3x64xf32>
    %190 = vector.extract_strided_slice %147 {offsets = [9, 0], sizes = [3, 64], strides = [1, 1]} : vector<27x64xf32> to vector<3x64xf32>
    %cst_65 = arith.constant 0.000000e+00 : f32
    %191 = vector.broadcast %cst_65 : f32 to vector<3x1xf32>
    %192 = vector.extract_strided_slice %190 {offsets = [0, 0], sizes = [3, 63], strides = [1, 1]} : vector<3x64xf32> to vector<3x63xf32>
    %193 = tpu.concatenate %191, %192 in 1 : vector<3x1xf32>, vector<3x63xf32> -> vector<3x64xf32>
    %c-1_i32_66 = arith.constant -1 : i32
    %194 = vector.broadcast %c-1_i32_66 : i32 to vector<1x64xi32>
    %195 = arith.addi %17, %194 : vector<1x64xi32>
    %c0_i32_67 = arith.constant 0 : i32
    %196 = vector.broadcast %c0_i32_67 : i32 to vector<1x64xi32>
    %197 = arith.cmpi sge, %195, %196 : vector<1x64xi32>
    %c-1_i32_68 = arith.constant -1 : i32
    %198 = vector.broadcast %c-1_i32_68 : i32 to vector<1x64xi32>
    %199 = arith.addi %17, %198 : vector<1x64xi32>
    %c8_i32_69 = arith.constant 8 : i32
    %200 = vector.broadcast %c8_i32_69 : i32 to vector<1x64xi32>
    %201 = arith.cmpi slt, %199, %200 : vector<1x64xi32>
    %202 = arith.andi %197, %201 : vector<1x64xi1>
    %cst_70 = arith.constant 0.000000e+00 : f32
    %203 = vector.shape_cast %202 : vector<1x64xi1> to vector<1x64xi1>
    %204 = vector.broadcast %203 : vector<1x64xi1> to vector<3x64xi1>
    %205 = vector.broadcast %cst_70 : f32 to vector<3x64xf32>
    %206 = arith.select %204, %193, %205 : vector<3x64xi1>, vector<3x64xf32>
    %207 = arith.addf %189, %206 : vector<3x64xf32>
    %208 = vector.extract_strided_slice %147 {offsets = [12, 0], sizes = [3, 64], strides = [1, 1]} : vector<27x64xf32> to vector<3x64xf32>
    %209 = arith.addf %207, %208 : vector<3x64xf32>
    %210 = vector.extract_strided_slice %147 {offsets = [15, 0], sizes = [3, 64], strides = [1, 1]} : vector<27x64xf32> to vector<3x64xf32>
    %cst_71 = arith.constant 0.000000e+00 : f32
    %211 = vector.broadcast %cst_71 : f32 to vector<3x1xf32>
    %212 = vector.extract_strided_slice %210 {offsets = [0, 1], sizes = [3, 63], strides = [1, 1]} : vector<3x64xf32> to vector<3x63xf32>
    %213 = tpu.concatenate %212, %211 in 1 : vector<3x63xf32>, vector<3x1xf32> -> vector<3x64xf32>
    %c1_i32_72 = arith.constant 1 : i32
    %214 = vector.broadcast %c1_i32_72 : i32 to vector<1x64xi32>
    %215 = arith.addi %17, %214 : vector<1x64xi32>
    %c0_i32_73 = arith.constant 0 : i32
    %216 = vector.broadcast %c0_i32_73 : i32 to vector<1x64xi32>
    %217 = arith.cmpi sge, %215, %216 : vector<1x64xi32>
    %c1_i32_74 = arith.constant 1 : i32
    %218 = vector.broadcast %c1_i32_74 : i32 to vector<1x64xi32>
    %219 = arith.addi %17, %218 : vector<1x64xi32>
    %c8_i32_75 = arith.constant 8 : i32
    %220 = vector.broadcast %c8_i32_75 : i32 to vector<1x64xi32>
    %221 = arith.cmpi slt, %219, %220 : vector<1x64xi32>
    %222 = arith.andi %217, %221 : vector<1x64xi1>
    %cst_76 = arith.constant 0.000000e+00 : f32
    %223 = vector.shape_cast %222 : vector<1x64xi1> to vector<1x64xi1>
    %224 = vector.broadcast %223 : vector<1x64xi1> to vector<3x64xi1>
    %225 = vector.broadcast %cst_76 : f32 to vector<3x64xf32>
    %226 = arith.select %224, %213, %225 : vector<3x64xi1>, vector<3x64xf32>
    %227 = arith.addf %209, %226 : vector<3x64xf32>
    %228 = vector.extract_strided_slice %147 {offsets = [18, 0], sizes = [3, 64], strides = [1, 1]} : vector<27x64xf32> to vector<3x64xf32>
    %cst_77 = arith.constant 0.000000e+00 : f32
    %229 = vector.broadcast %cst_77 : f32 to vector<3x7xf32>
    %230 = vector.extract_strided_slice %228 {offsets = [0, 7], sizes = [3, 57], strides = [1, 1]} : vector<3x64xf32> to vector<3x57xf32>
    %231 = tpu.concatenate %230, %229 in 1 : vector<3x57xf32>, vector<3x7xf32> -> vector<3x64xf32>
    %c-1_i32_78 = arith.constant -1 : i32
    %232 = vector.broadcast %c-1_i32_78 : i32 to vector<1x64xi32>
    %233 = arith.addi %17, %232 : vector<1x64xi32>
    %c0_i32_79 = arith.constant 0 : i32
    %234 = vector.broadcast %c0_i32_79 : i32 to vector<1x64xi32>
    %235 = arith.cmpi sge, %233, %234 : vector<1x64xi32>
    %c-1_i32_80 = arith.constant -1 : i32
    %236 = vector.broadcast %c-1_i32_80 : i32 to vector<1x64xi32>
    %237 = arith.addi %17, %236 : vector<1x64xi32>
    %c8_i32_81 = arith.constant 8 : i32
    %238 = vector.broadcast %c8_i32_81 : i32 to vector<1x64xi32>
    %239 = arith.cmpi slt, %237, %238 : vector<1x64xi32>
    %240 = arith.andi %235, %239 : vector<1x64xi1>
    %cst_82 = arith.constant 0.000000e+00 : f32
    %241 = vector.shape_cast %240 : vector<1x64xi1> to vector<1x64xi1>
    %242 = vector.broadcast %241 : vector<1x64xi1> to vector<3x64xi1>
    %243 = vector.broadcast %cst_82 : f32 to vector<3x64xf32>
    %244 = arith.select %242, %231, %243 : vector<3x64xi1>, vector<3x64xf32>
    %245 = arith.addf %227, %244 : vector<3x64xf32>
    %246 = vector.extract_strided_slice %147 {offsets = [21, 0], sizes = [3, 64], strides = [1, 1]} : vector<27x64xf32> to vector<3x64xf32>
    %cst_83 = arith.constant 0.000000e+00 : f32
    %247 = vector.broadcast %cst_83 : f32 to vector<3x8xf32>
    %248 = vector.extract_strided_slice %246 {offsets = [0, 8], sizes = [3, 56], strides = [1, 1]} : vector<3x64xf32> to vector<3x56xf32>
    %249 = tpu.concatenate %248, %247 in 1 : vector<3x56xf32>, vector<3x8xf32> -> vector<3x64xf32>
    %250 = arith.addf %245, %249 : vector<3x64xf32>
    %251 = vector.extract_strided_slice %147 {offsets = [24, 0], sizes = [3, 64], strides = [1, 1]} : vector<27x64xf32> to vector<3x64xf32>
    %cst_84 = arith.constant 0.000000e+00 : f32
    %252 = vector.broadcast %cst_84 : f32 to vector<3x9xf32>
    %253 = vector.extract_strided_slice %251 {offsets = [0, 9], sizes = [3, 55], strides = [1, 1]} : vector<3x64xf32> to vector<3x55xf32>
    %254 = tpu.concatenate %253, %252 in 1 : vector<3x55xf32>, vector<3x9xf32> -> vector<3x64xf32>
    %c1_i32_85 = arith.constant 1 : i32
    %255 = vector.broadcast %c1_i32_85 : i32 to vector<1x64xi32>
    %256 = arith.addi %17, %255 : vector<1x64xi32>
    %c0_i32_86 = arith.constant 0 : i32
    %257 = vector.broadcast %c0_i32_86 : i32 to vector<1x64xi32>
    %258 = arith.cmpi sge, %256, %257 : vector<1x64xi32>
    %c1_i32_87 = arith.constant 1 : i32
    %259 = vector.broadcast %c1_i32_87 : i32 to vector<1x64xi32>
    %260 = arith.addi %17, %259 : vector<1x64xi32>
    %c8_i32_88 = arith.constant 8 : i32
    %261 = vector.broadcast %c8_i32_88 : i32 to vector<1x64xi32>
    %262 = arith.cmpi slt, %260, %261 : vector<1x64xi32>
    %263 = arith.andi %258, %262 : vector<1x64xi1>
    %cst_89 = arith.constant 0.000000e+00 : f32
    %264 = vector.shape_cast %263 : vector<1x64xi1> to vector<1x64xi1>
    %265 = vector.broadcast %264 : vector<1x64xi1> to vector<3x64xi1>
    %266 = vector.broadcast %cst_89 : f32 to vector<3x64xf32>
    %267 = arith.select %265, %254, %266 : vector<3x64xi1>, vector<3x64xf32>
    %268 = arith.addf %250, %267 : vector<3x64xf32>
    %c1_90 = arith.constant 1 : index
    %c0_91 = arith.constant 0 : index
    %c0_92 = arith.constant 0 : index
    %269 = vector.load %arg3[%c1_90, %c0_91, %c0_92] : memref<2x3x64xf32, #tpu.memory_space<vmem>>, vector<1x3x64xf32>
    %270 = vector.shape_cast %269 : vector<1x3x64xf32> to vector<3x64xf32>
    %271 = vector.shape_cast %268 : vector<3x64xf32> to vector<1x3x64xf32>
    tpu.vector_store %arg3[%c1_90, %c0_91, %c0_92], %271 {strides = array<i32>} : memref<2x3x64xf32, #tpu.memory_space<vmem>>, vector<1x3x64xf32>,
    return
  }
  func.func @transform_0(%arg0: i32) -> (i32, i32, i32) {
    %c0_i32 = arith.constant 0 : i32
    %c0_i32_0 = arith.constant 0 : i32
    %c0_i32_1 = arith.constant 0 : i32
    return %arg0, %c0_i32, %c0_i32_0 : i32, i32, i32
  }
  func.func @transform_1(%arg0: i32) -> (i32, i32) {
    %c0_i32 = arith.constant 0 : i32
    %c0_i32_0 = arith.constant 0 : i32
    %c0_i32_1 = arith.constant 0 : i32
    return %c0_i32, %c0_i32_0 : i32, i32
  }
  func.func @transform_2(%arg0: i32) -> (i32, i32, i32) {
    %c0_i32 = arith.constant 0 : i32
    %c0_i32_0 = arith.constant 0 : i32
    %c0_i32_1 = arith.constant 0 : i32
    return %arg0, %c0_i32, %c0_i32_0 : i32, i32, i32
  }
}

</mosaic_0001>

<llo_original>
// kernel: shrinkage_channels_forward.1
$region0: #{shrinkage_channels_forward.1}
  #allocation0 [shape = 'u32[]', space=smem, size = 0x4, offset = 0x4, fixed_abs, tag = 'smem constant byte address 0x4 - core index']
  #allocation1 [shape = 'u32[144,128]{1,0:T(1,128)}', space=vmem, size = 0x12000, scoped, tag = 'internal scratch']
  %s0 = inlined_call_operand.vmem [shape: f32[2,256,64], index: 0, kind: input, shape index: {}]
  %s1 = inlined_call_operand.vmem [shape: f32[27,256], index: 1, kind: input, shape index: {}]
  %s2 = inlined_call_operand.vmem [shape: f32[2,3,64], index: 2, kind: output, shape index: {}]
  %s3 = sld [smem:[#allocation0]]
  $region18: #{shrinkage_channels_forward.1} parent=0
    _
  %s5 = ssub.s32 1, %s3
  %s6 = scalar_select 0, %s5, %s3
  // Predicated region
  $region2: #{shrinkage_channels_forward.1} parent=0 // pred_check
    _
  $region3: #{shrinkage_channels_forward.1} parent=0 // pred_check_branch
    %8 = sbr.rel (0) target = $region5
  $region4: #{shrinkage_channels_forward.1} parent=0 // pred_region
    _
  $region5: #{shrinkage_channels_forward.1} parent=0 // pred_fallthru
    _
  // Predicated region
  $region6: #{shrinkage_channels_forward.1} parent=0 // pred_check
    _
  $region7: #{shrinkage_channels_forward.1} parent=0 // pred_check_branch
    %10 = sbr.rel (0) target = $region9
  $region8: #{shrinkage_channels_forward.1} parent=0 // pred_region
    _
  $region9: #{shrinkage_channels_forward.1} parent=0 // pred_fallthru
    _
  %v11 = vld [vmem:[%s1] sm:$0xff]
  %v12 = vld [vmem:[%s1 + $0x8] sm:$0xff]
  %v13 = vld [vmem:[%s1 + $0x10] sm:$0xff]
  %v14 = vld [vmem:[%s1 + $0x18] sm:$0xff]
  %v15 = vld [vmem:[%s1 + $0x20] sm:$0xff]
  %v16 = vld [vmem:[%s1 + $0x28] sm:$0xff]
  %v17 = vld [vmem:[%s1 + $0x30] sm:$0x7]
  %v18 = vld [vmem:[%s1 + $0x38] sm:$0x7]
  %v19 = vlaneseq
  %v20 = vand.u32 %v19, 127
  %vm21 = vcmp.lt.s32.totalorder %v20, 0
  %v22 = vsub.s32 0, %v20
  %v23 = vsel %vm21, %v22, %v20
  %v24 = vshrl.u32 %v23, 3
  %v25 = vand.u32 %v23, 7
  %v26 = vsub.s32 0, %v25
  %v27 = vsel %vm21, %v26, %v25
  %vm28 = vcmp.ne.s32.totalorder %v27, 0
  %vm29 = vcmp.lt.s32.totalorder %v27, 0
  %vm30 = vmand %vm29, %vm28
  %v31 = vadd.s32 %v27, 8
  %v32 = vsel %vm30, %v31, %v27
  %v33 = vld [vmem:[%s0] sm:$0xff]
  %v34 = vld [vmem:[%s0 + $0x8] sm:$0xff]
  %v35 = vld [vmem:[%s0 + $0x10] sm:$0xff]
  %v36 = vld [vmem:[%s0 + $0x18] sm:$0xff]
  %v37 = vld [vmem:[%s0 + $0x20] sm:$0xff]
  %v38 = vld [vmem:[%s0 + $0x28] sm:$0xff]
  %v39 = vld [vmem:[%s0 + $0x30] sm:$0xff]
  %v40 = vld [vmem:[%s0 + $0x38] sm:$0xff]
  %v41 = vld [vmem:[%s0 + $0x40] sm:$0xff]
  %v42 = vld [vmem:[%s0 + $0x48] sm:$0xff]
  %v43 = vld [vmem:[%s0 + $0x50] sm:$0xff]
  %v44 = vld [vmem:[%s0 + $0x58] sm:$0xff]
  %v45 = vld [vmem:[%s0 + $0x60] sm:$0xff]
  %v46 = vld [vmem:[%s0 + $0x68] sm:$0xff]
  %v47 = vld [vmem:[%s0 + $0x70] sm:$0xff]
  %v48 = vld [vmem:[%s0 + $0x78] sm:$0xff]
  %v49 = vld [vmem:[%s0 + $0x80] sm:$0xff]
  %v50 = vld [vmem:[%s0 + $0x88] sm:$0xff]
  %v51 = vld [vmem:[%s0 + $0x90] sm:$0xff]
  %v52 = vld [vmem:[%s0 + $0x98] sm:$0xff]
  %v53 = vld [vmem:[%s0 + $0xa0] sm:$0xff]
  %v54 = vld [vmem:[%s0 + $0xa8] sm:$0xff]
  %v55 = vld [vmem:[%s0 + $0xb0] sm:$0xff]
  %v56 = vld [vmem:[%s0 + $0xb8] sm:$0xff]
  %v57 = vld [vmem:[%s0 + $0xc0] sm:$0xff]
  %v58 = vld [vmem:[%s0 + $0xc8] sm:$0xff]
  %v59 = vld [vmem:[%s0 + $0xd0] sm:$0xff]
  %v60 = vld [vmem:[%s0 + $0xd8] sm:$0xff]
  %v61 = vld [vmem:[%s0 + $0xe0] sm:$0xff]
  %v62 = vld [vmem:[%s0 + $0xe8] sm:$0xff]
  %v63 = vld [vmem:[%s0 + $0xf0] sm:$0xff]
  %v64 = vld [vmem:[%s0 + $0xf8] sm:$0xff]
  %65 = vmatprep.subr.mxu0 0.0
  %v66 = vand.u32 %v33, 4294901760
  %67 = vmatpush1.msra.mxu0 %v66
  %68 = vmatprep.subr.mxu0 0.0
  %v69 = vand.u32 %v34, 4294901760
  %70 = vmatpush1.msra.mxu0 %v69
  %71 = vmatprep.subr.mxu0 0.0
  %v72 = vand.u32 %v35, 4294901760
  %73 = vmatpush1.msra.mxu0 %v72
  %74 = vmatprep.subr.mxu0 0.0
  %v75 = vand.u32 %v36, 4294901760
  %76 = vmatpush1.msra.mxu0 %v75
  %77 = vmatprep.subr.mxu0 0.0
  %v78 = vand.u32 %v37, 4294901760
  %79 = vmatpush1.msra.mxu0 %v78
  %80 = vmatprep.subr.mxu0 0.0
  %v81 = vand.u32 %v38, 4294901760
  %82 = vmatpush1.msra.mxu0 %v81
  %83 = vmatprep.subr.mxu0 0.0
  %v84 = vand.u32 %v39, 4294901760
  %85 = vmatpush1.msra.mxu0 %v84
  %86 = vmatprep.subr.mxu0 0.0
  %v87 = vand.u32 %v40, 4294901760
  %88 = vmatpush1.msra.mxu0 %v87
  %89 = vmatprep.subr.mxu0 0.0
  %v90 = vand.u32 %v41, 4294901760
  %91 = vmatpush1.msra.mxu0 %v90
  %92 = vmatprep.subr.mxu0 0.0
  %v93 = vand.u32 %v42, 4294901760
  %94 = vmatpush1.msra.mxu0 %v93
  %95 = vmatprep.subr.mxu0 0.0
  %v96 = vand.u32 %v43, 4294901760
  %97 = vmatpush1.msra.mxu0 %v96
  %98 = vmatprep.subr.mxu0 0.0
  %v99 = vand.u32 %v44, 4294901760
  %100 = vmatpush1.msra.mxu0 %v99
  %101 = vmatprep.subr.mxu0 0.0
  %v102 = vand.u32 %v45, 4294901760
  %103 = vmatpush1.msra.mxu0 %v102
  %104 = vmatprep.subr.mxu0 0.0
  %v105 = vand.u32 %v46, 4294901760
  %106 = vmatpush1.msra.mxu0 %v105
  %107 = vmatprep.subr.mxu0 0.0
  %v108 = vand.u32 %v47, 4294901760
  %109 = vmatpush1.msra.mxu0 %v108
  %110 = vmatprep.subr.mxu0 0.0
  %v111 = vand.u32 %v48, 4294901760
  %112 = vmatpush1.msra.mxu0 %v111
  %113 = vmatprep.subr.mxu0 0.0
  %v114 = vand.u32 %v49, 4294901760
  %115 = vmatpush1.msra.mxu0 %v114
  %116 = vmatprep.subr.mxu0 0.0
  %v117 = vand.u32 %v50, 4294901760
  %118 = vmatpush1.msra.mxu0 %v117
  %119 = vmatprep.subr.mxu0 0.0
  %v120 = vand.u32 %v51, 4294901760
  %121 = vmatpush1.msra.mxu0 %v120
  %122 = vmatprep.subr.mxu0 0.0
  %v123 = vand.u32 %v52, 4294901760
  %124 = vmatpush1.msra.mxu0 %v123
  %125 = vmatprep.subr.mxu0 0.0
  %v126 = vand.u32 %v53, 4294901760
  %127 = vmatpush1.msra.mxu0 %v126
  %128 = vmatprep.subr.mxu0 0.0
  %v129 = vand.u32 %v54, 4294901760
  %130 = vmatpush1.msra.mxu0 %v129
  %131 = vmatprep.subr.mxu0 0.0
  %v132 = vand.u32 %v55, 4294901760
  %133 = vmatpush1.msra.mxu0 %v132
  %134 = vmatprep.subr.mxu0 0.0
  %v135 = vand.u32 %v56, 4294901760
  %136 = vmatpush1.msra.mxu0 %v135
  %137 = vmatprep.subr.mxu0 0.0
  %v138 = vand.u32 %v57, 4294901760
  %139 = vmatpush1.msra.mxu0 %v138
  %140 = vmatprep.subr.mxu0 0.0
  %v141 = vand.u32 %v58, 4294901760
  %142 = vmatpush1.msra.mxu0 %v141
  %143 = vmatprep.subr.mxu0 0.0
  %v144 = vand.u32 %v59, 4294901760
  %145 = vmatpush1.msra.mxu0 %v144
  %146 = vmatprep.subr.mxu0 0.0
  %v147 = vand.u32 %v60, 4294901760
  %148 = vmatpush1.msra.mxu0 %v147
  %149 = vmatprep.subr.mxu0 0.0
  %v150 = vand.u32 %v61, 4294901760
  %151 = vmatpush1.msra.mxu0 %v150
  %152 = vmatprep.subr.mxu0 0.0
  %v153 = vand.u32 %v62, 4294901760
  %154 = vmatpush1.msra.mxu0 %v153
  %155 = vmatprep.subr.mxu0 0.0
  %v156 = vand.u32 %v63, 4294901760
  %157 = vmatpush1.msra.mxu0 %v156
  %158 = vmatprep.subr.mxu0 0.0
  %v159 = vand.u32 %v64, 4294901760
  %160 = vmatpush1.msra.mxu0 %v159
  %v161 = vand.u32 %v12, 4294901760
  %v162 = vsub.f32 %v12, %v161
  %v163 = vand.u32 %v162, 4294901760
  %v164 = vsub.f32 %v162, %v163
  %v165 = vand.u32 %v164, 4294901760
  %166 = vmatprep.mubr.f32.mxu0 %v165
  %v167 = vand.u32 %v11, 4294901760
  %v168 = vsub.f32 %v11, %v167
  %v169 = vand.u32 %v168, 4294901760
  %v170 = vsub.f32 %v168, %v169
  %v171 = vand.u32 %v170, 4294901760
  %172 = vmatmul.mubr.f32.gmra.mrb[0].mxu0 %v171
  %v173 = vpop.f32.mrb[0].mxu0
  %v174 = vadd.f32 0.0, %v173
  %v175 = vpop.f32.mrb[0].mxu0
  %v176 = vand.u32 %v14, 4294901760
  %v177 = vsub.f32 %v14, %v176
  %v178 = vand.u32 %v177, 4294901760
  %v179 = vsub.f32 %v177, %v178
  %v180 = vand.u32 %v179, 4294901760
  %181 = vmatprep.mubr.f32.mxu0 %v180
  %v182 = vand.u32 %v13, 4294901760
  %v183 = vsub.f32 %v13, %v182
  %v184 = vand.u32 %v183, 4294901760
  %v185 = vsub.f32 %v183, %v184
  %v186 = vand.u32 %v185, 4294901760
  %187 = vmatmul.mubr.f32.gmra.mrb[0].mxu0 %v186
  %v188 = vpop.f32.mrb[0].mxu0
  %v189 = vadd.f32 0.0, %v188
  %v190 = vpop.f32.mrb[0].mxu0
  %v191 = vand.u32 %v16, 4294901760
  %v192 = vsub.f32 %v16, %v191
  %v193 = vand.u32 %v192, 4294901760
  %v194 = vsub.f32 %v192, %v193
  %v195 = vand.u32 %v194, 4294901760
  %196 = vmatprep.mubr.f32.mxu0 %v195
  %v197 = vand.u32 %v15, 4294901760
  %v198 = vsub.f32 %v15, %v197
  %v199 = vand.u32 %v198, 4294901760
  %v200 = vsub.f32 %v198, %v199
  %v201 = vand.u32 %v200, 4294901760
  %202 = vmatmul.mubr.f32.gmra.mrb[0].mxu0 %v201
  %v203 = vpop.f32.mrb[0].mxu0
  %v204 = vadd.f32 0.0, %v203
  %v205 = vpop.f32.mrb[0].mxu0
  %v206 = vand.u32 %v18, 4294901760
  %v207 = vsub.f32 %v18, %v206
  %v208 = vand.u32 %v207, 4294901760
  %v209 = vsub.f32 %v207, %v208
  %v210 = vand.u32 %v209, 4294901760
  %211 = vmatprep.mubr.f32.mxu0 %v210
  %v212 = vand.u32 %v17, 4294901760
  %v213 = vsub.f32 %v17, %v212
  %v214 = vand.u32 %v213, 4294901760
  %v215 = vsub.f32 %v213, %v214
  %v216 = vand.u32 %v215, 4294901760
  %217 = vmatmul.mubr.f32.gmra.mrb[0].mxu0 %v216
  %v218 = vpop.f32.mrb[0].mxu0
  %v219 = vadd.f32 0.0, %v218
  %v220 = vpop.f32.mrb[0].mxu0
  %221 = vdwg.mxu0
  %222 = vmatprep.subr.mxu0 0.0
  %v223 = vand.u32 %v33, 4294901760
  %v224 = vsub.f32 %v33, %v223
  %v225 = vand.u32 %v224, 4294901760
  %v226 = vsub.f32 %v224, %v225
  %v227 = vand.u32 %v226, 4294901760
  %228 = vmatpush1.msra.mxu0 %v227
  %229 = vmatprep.subr.mxu0 0.0
  %v230 = vand.u32 %v34, 4294901760
  %v231 = vsub.f32 %v34, %v230
  %v232 = vand.u32 %v231, 4294901760
  %v233 = vsub.f32 %v231, %v232
  %v234 = vand.u32 %v233, 4294901760
  %235 = vmatpush1.msra.mxu0 %v234
  %236 = vmatprep.subr.mxu0 0.0
  %v237 = vand.u32 %v35, 4294901760
  %v238 = vsub.f32 %v35, %v237
  %v239 = vand.u32 %v238, 4294901760
  %v240 = vsub.f32 %v238, %v239
  %v241 = vand.u32 %v240, 4294901760
  %242 = vmatpush1.msra.mxu0 %v241
  %243 = vmatprep.subr.mxu0 0.0
  %v244 = vand.u32 %v36, 4294901760
  %v245 = vsub.f32 %v36, %v244
  %v246 = vand.u32 %v245, 4294901760
  %v247 = vsub.f32 %v245, %v246
  %v248 = vand.u32 %v247, 4294901760
  %249 = vmatpush1.msra.mxu0 %v248
  %250 = vmatprep.subr.mxu0 0.0
  %v251 = vand.u32 %v37, 4294901760
  %v252 = vsub.f32 %v37, %v251
  %v253 = vand.u32 %v252, 4294901760
  %v254 = vsub.f32 %v252, %v253
  %v255 = vand.u32 %v254, 4294901760
  %256 = vmatpush1.msra.mxu0 %v255
  %257 = vmatprep.subr.mxu0 0.0
  %v258 = vand.u32 %v38, 4294901760
  %v259 = vsub.f32 %v38, %v258
  %v260 = vand.u32 %v259, 4294901760
  %v261 = vsub.f32 %v259, %v260
  %v262 = vand.u32 %v261, 4294901760
  %263 = vmatpush1.msra.mxu0 %v262
  %264 = vmatprep.subr.mxu0 0.0
  %v265 = vand.u32 %v39, 4294901760
  %v266 = vsub.f32 %v39, %v265
  %v267 = vand.u32 %v266, 4294901760
  %v268 = vsub.f32 %v266, %v267
  %v269 = vand.u32 %v268, 4294901760
  %270 = vmatpush1.msra.mxu0 %v269
  %271 = vmatprep.subr.mxu0 0.0
  %v272 = vand.u32 %v40, 4294901760
  %v273 = vsub.f32 %v40, %v272
  %v274 = vand.u32 %v273, 4294901760
  %v275 = vsub.f32 %v273, %v274
  %v276 = vand.u32 %v275, 4294901760
  %277 = vmatpush1.msra.mxu0 %v276
  %278 = vmatprep.subr.mxu0 0.0
  %v279 = vand.u32 %v41, 4294901760
  %v280 = vsub.f32 %v41, %v279
  %v281 = vand.u32 %v280, 4294901760
  %v282 = vsub.f32 %v280, %v281
  %v283 = vand.u32 %v282, 4294901760
  %284 = vmatpush1.msra.mxu0 %v283
  %285 = vmatprep.subr.mxu0 0.0
  %v286 = vand.u32 %v42, 4294901760
  %v287 = vsub.f32 %v42, %v286
  %v288 = vand.u32 %v287, 4294901760
  %v289 = vsub.f32 %v287, %v288
  %v290 = vand.u32 %v289, 4294901760
  %291 = vmatpush1.msra.mxu0 %v290
  %292 = vmatprep.subr.mxu0 0.0
  %v293 = vand.u32 %v43, 4294901760
  %v294 = vsub.f32 %v43, %v293
  %v295 = vand.u32 %v294, 4294901760
  %v296 = vsub.f32 %v294, %v295
  %v297 = vand.u32 %v296, 4294901760
  %298 = vmatpush1.msra.mxu0 %v297
  %299 = vmatprep.subr.mxu0 0.0
  %v300 = vand.u32 %v44, 4294901760
  %v301 = vsub.f32 %v44, %v300
  %v302 = vand.u32 %v301, 4294901760
  %v303 = vsub.f32 %v301, %v302
  %v304 = vand.u32 %v303, 4294901760
  %305 = vmatpush1.msra.mxu0 %v304
  %306 = vmatprep.subr.mxu0 0.0
  %v307 = vand.u32 %v45, 4294901760
  %v308 = vsub.f32 %v45, %v307
  %v309 = vand.u32 %v308, 4294901760
  %v310 = vsub.f32 %v308, %v309
  %v311 = vand.u32 %v310, 4294901760
  %312 = vmatpush1.msra.mxu0 %v311
  %313 = vmatprep.subr.mxu0 0.0
  %v314 = vand.u32 %v46, 4294901760
  %v315 = vsub.f32 %v46, %v314
  %v316 = vand.u32 %v315, 4294901760
  %v317 = vsub.f32 %v315, %v316
  %v318 = vand.u32 %v317, 4294901760
  %319 = vmatpush1.msra.mxu0 %v318
  %320 = vmatprep.subr.mxu0 0.0
  %v321 = vand.u32 %v47, 4294901760
  %v322 = vsub.f32 %v47, %v321
  %v323 = vand.u32 %v322, 4294901760
  %v324 = vsub.f32 %v322, %v323
  %v325 = vand.u32 %v324, 4294901760
  %326 = vmatpush1.msra.mxu0 %v325
  %327 = vmatprep.subr.mxu0 0.0
  %v328 = vand.u32 %v48, 4294901760
  %v329 = vsub.f32 %v48, %v328
  %v330 = vand.u32 %v329, 4294901760
  %v331 = vsub.f32 %v329, %v330
  %v332 = vand.u32 %v331, 4294901760
  %333 = vmatpush1.msra.mxu0 %v332
  %334 = vmatprep.subr.mxu0 0.0
  %v335 = vand.u32 %v49, 4294901760
  %v336 = vsub.f32 %v49, %v335
  %v337 = vand.u32 %v336, 4294901760
  %v338 = vsub.f32 %v336, %v337
  %v339 = vand.u32 %v338, 4294901760
  %340 = vmatpush1.msra.mxu0 %v339
  %341 = vmatprep.subr.mxu0 0.0
  %v342 = vand.u32 %v50, 4294901760
  %v343 = vsub.f32 %v50, %v342
  %v344 = vand.u32 %v343, 4294901760
  %v345 = vsub.f32 %v343, %v344
  %v346 = vand.u32 %v345, 4294901760
  %347 = vmatpush1.msra.mxu0 %v346
  %348 = vmatprep.subr.mxu0 0.0
  %v349 = vand.u32 %v51, 4294901760
  %v350 = vsub.f32 %v51, %v349
  %v351 = vand.u32 %v350, 4294901760
  %v352 = vsub.f32 %v350, %v351
  %v353 = vand.u32 %v352, 4294901760
  %354 = vmatpush1.msra.mxu0 %v353
  %355 = vmatprep.subr.mxu0 0.0
  %v356 = vand.u32 %v52, 4294901760
  %v357 = vsub.f32 %v52, %v356
  %v358 = vand.u32 %v357, 4294901760
  %v359 = vsub.f32 %v357, %v358
  %v360 = vand.u32 %v359, 4294901760
  %361 = vmatpush1.msra.mxu0 %v360
  %362 = vmatprep.subr.mxu0 0.0
  %v363 = vand.u32 %v53, 4294901760
  %v364 = vsub.f32 %v53, %v363
  %v365 = vand.u32 %v364, 4294901760
  %v366 = vsub.f32 %v364, %v365
  %v367 = vand.u32 %v366, 4294901760
  %368 = vmatpush1.msra.mxu0 %v367
  %369 = vmatprep.subr.mxu0 0.0
  %v370 = vand.u32 %v54, 4294901760
  %v371 = vsub.f32 %v54, %v370
  %v372 = vand.u32 %v371, 4294901760
  %v373 = vsub.f32 %v371, %v372
  %v374 = vand.u32 %v373, 4294901760
  %375 = vmatpush1.msra.mxu0 %v374
  %376 = vmatprep.subr.mxu0 0.0
  %v377 = vand.u32 %v55, 4294901760
  %v378 = vsub.f32 %v55, %v377
  %v379 = vand.u32 %v378, 4294901760
  %v380 = vsub.f32 %v378, %v379
  %v381 = vand.u32 %v380, 4294901760
  %382 = vmatpush1.msra.mxu0 %v381
  %383 = vmatprep.subr.mxu0 0.0
  %v384 = vand.u32 %v56, 4294901760
  %v385 = vsub.f32 %v56, %v384
  %v386 = vand.u32 %v385, 4294901760
  %v387 = vsub.f32 %v385, %v386
  %v388 = vand.u32 %v387, 4294901760
  %389 = vmatpush1.msra.mxu0 %v388
  %390 = vmatprep.subr.mxu0 0.0
  %v391 = vand.u32 %v57, 4294901760
  %v392 = vsub.f32 %v57, %v391
  %v393 = vand.u32 %v392, 4294901760
  %v394 = vsub.f32 %v392, %v393
  %v395 = vand.u32 %v394, 4294901760
  %396 = vmatpush1.msra.mxu0 %v395
  %397 = vmatprep.subr.mxu0 0.0
  %v398 = vand.u32 %v58, 4294901760
  %v399 = vsub.f32 %v58, %v398
  %v400 = vand.u32 %v399, 4294901760
  %v401 = vsub.f32 %v399, %v400
  %v402 = vand.u32 %v401, 4294901760
  %403 = vmatpush1.msra.mxu0 %v402
  %404 = vmatprep.subr.mxu0 0.0
  %v405 = vand.u32 %v59, 4294901760
  %v406 = vsub.f32 %v59, %v405
  %v407 = vand.u32 %v406, 4294901760
  %v408 = vsub.f32 %v406, %v407
  %v409 = vand.u32 %v408, 4294901760
  %410 = vmatpush1.msra.mxu0 %v409
  %411 = vmatprep.subr.mxu0 0.0
  %v412 = vand.u32 %v60, 4294901760
  %v413 = vsub.f32 %v60, %v412
  %v414 = vand.u32 %v413, 4294901760
  %v415 = vsub.f32 %v413, %v414
  %v416 = vand.u32 %v415, 4294901760
  %417 = vmatpush1.msra.mxu0 %v416
  %418 = vmatprep.subr.mxu0 0.0
  %v419 = vand.u32 %v61, 4294901760
  %v420 = vsub.f32 %v61, %v419
  %v421 = vand.u32 %v420, 4294901760
  %v422 = vsub.f32 %v420, %v421
  %v423 = vand.u32 %v422, 4294901760
  %424 = vmatpush1.msra.mxu0 %v423
  %425 = vmatprep.subr.mxu0 0.0
  %v426 = vand.u32 %v62, 4294901760
  %v427 = vsub.f32 %v62, %v426
  %v428 = vand.u32 %v427, 4294901760
  %v429 = vsub.f32 %v427, %v428
  %v430 = vand.u32 %v429, 4294901760
  %431 = vmatpush1.msra.mxu0 %v430
  %432 = vmatprep.subr.mxu0 0.0
  %v433 = vand.u32 %v63, 4294901760
  %v434 = vsub.f32 %v63, %v433
  %v435 = vand.u32 %v434, 4294901760
  %v436 = vsub.f32 %v434, %v435
  %v437 = vand.u32 %v436, 4294901760
  %438 = vmatpush1.msra.mxu0 %v437
  %439 = vmatprep.subr.mxu0 0.0
  %v440 = vand.u32 %v64, 4294901760
  %v441 = vsub.f32 %v64, %v440
  %v442 = vand.u32 %v441, 4294901760
  %v443 = vsub.f32 %v441, %v442
  %v444 = vand.u32 %v443, 4294901760
  %445 = vmatpush1.msra.mxu0 %v444
  %v446 = vand.u32 %v12, 4294901760
  %447 = vmatprep.mubr.f32.mxu0 %v446
  %v448 = vand.u32 %v11, 4294901760
  %449 = vmatmul.mubr.f32.gmra.mrb[0].mxu0 %v448
  %v450 = vpop.f32.mrb[0].mxu0
  %v451 = vadd.f32 %v174, %v450
  %v452 = vpop.f32.mrb[0].mxu0
  %v453 = vand.u32 %v14, 4294901760
  %454 = vmatprep.mubr.f32.mxu0 %v453
  %v455 = vand.u32 %v13, 4294901760
  %456 = vmatmul.mubr.f32.gmra.mrb[0].mxu0 %v455
  %v457 = vpop.f32.mrb[0].mxu0
  %v458 = vadd.f32 %v189, %v457
  %v459 = vpop.f32.mrb[0].mxu0
  %v460 = vand.u32 %v16, 4294901760
  %461 = vmatprep.mubr.f32.mxu0 %v460
  %v462 = vand.u32 %v15, 4294901760
  %463 = vmatmul.mubr.f32.gmra.mrb[0].mxu0 %v462
  %v464 = vpop.f32.mrb[0].mxu0
  %v465 = vadd.f32 %v204, %v464
  %v466 = vpop.f32.mrb[0].mxu0
  %v467 = vand.u32 %v18, 4294901760
  %468 = vmatprep.mubr.f32.mxu0 %v467
  %v469 = vand.u32 %v17, 4294901760
  %470 = vmatmul.mubr.f32.gmra.mrb[0].mxu0 %v469
  %v471 = vpop.f32.mrb[0].mxu0
  %v472 = vadd.f32 %v219, %v471
  %v473 = vpop.f32.mrb[0].mxu0
  %474 = vdwg.mxu0
  %475 = vmatprep.subr.mxu0 0.0
  %v476 = vand.u32 %v33, 4294901760
  %v477 = vsub.f32 %v33, %v476
  %478 = vmatpush1.msra.mxu0 %v477
  %479 = vmatprep.subr.mxu0 0.0
  %v480 = vand.u32 %v34, 4294901760
  %v481 = vsub.f32 %v34, %v480
  %482 = vmatpush1.msra.mxu0 %v481
  %483 = vmatprep.subr.mxu0 0.0
  %v484 = vand.u32 %v35, 4294901760
  %v485 = vsub.f32 %v35, %v484
  %486 = vmatpush1.msra.mxu0 %v485
  %487 = vmatprep.subr.mxu0 0.0
  %v488 = vand.u32 %v36, 4294901760
  %v489 = vsub.f32 %v36, %v488
  %490 = vmatpush1.msra.mxu0 %v489
  %491 = vmatprep.subr.mxu0 0.0
  %v492 = vand.u32 %v37, 4294901760
  %v493 = vsub.f32 %v37, %v492
  %494 = vmatpush1.msra.mxu0 %v493
  %495 = vmatprep.subr.mxu0 0.0
  %v496 = vand.u32 %v38, 4294901760
  %v497 = vsub.f32 %v38, %v496
  %498 = vmatpush1.msra.mxu0 %v497
  %499 = vmatprep.subr.mxu0 0.0
  %v500 = vand.u32 %v39, 4294901760
  %v501 = vsub.f32 %v39, %v500
  %502 = vmatpush1.msra.mxu0 %v501
  %503 = vmatprep.subr.mxu0 0.0
  %v504 = vand.u32 %v40, 4294901760
  %v505 = vsub.f32 %v40, %v504
  %506 = vmatpush1.msra.mxu0 %v505
  %507 = vmatprep.subr.mxu0 0.0
  %v508 = vand.u32 %v41, 4294901760
  %v509 = vsub.f32 %v41, %v508
  %510 = vmatpush1.msra.mxu0 %v509
  %511 = vmatprep.subr.mxu0 0.0
  %v512 = vand.u32 %v42, 4294901760
  %v513 = vsub.f32 %v42, %v512
  %514 = vmatpush1.msra.mxu0 %v513
  %515 = vmatprep.subr.mxu0 0.0
  %v516 = vand.u32 %v43, 4294901760
  %v517 = vsub.f32 %v43, %v516
  %518 = vmatpush1.msra.mxu0 %v517
  %519 = vmatprep.subr.mxu0 0.0
  %v520 = vand.u32 %v44, 4294901760
  %v521 = vsub.f32 %v44, %v520
  %522 = vmatpush1.msra.mxu0 %v521
  %523 = vmatprep.subr.mxu0 0.0
  %v524 = vand.u32 %v45, 4294901760
  %v525 = vsub.f32 %v45, %v524
  %526 = vmatpush1.msra.mxu0 %v525
  %527 = vmatprep.subr.mxu0 0.0
  %v528 = vand.u32 %v46, 4294901760
  %v529 = vsub.f32 %v46, %v528
  %530 = vmatpush1.msra.mxu0 %v529
  %531 = vmatprep.subr.mxu0 0.0
  %v532 = vand.u32 %v47, 4294901760
  %v533 = vsub.f32 %v47, %v532
  %534 = vmatpush1.msra.mxu0 %v533
  %535 = vmatprep.subr.mxu0 0.0
  %v536 = vand.u32 %v48, 4294901760
  %v537 = vsub.f32 %v48, %v536
  %538 = vmatpush1.msra.mxu0 %v537
  %539 = vmatprep.subr.mxu0 0.0
  %v540 = vand.u32 %v49, 4294901760
  %v541 = vsub.f32 %v49, %v540
  %542 = vmatpush1.msra.mxu0 %v541
  %543 = vmatprep.subr.mxu0 0.0
  %v544 = vand.u32 %v50, 4294901760
  %v545 = vsub.f32 %v50, %v544
  %546 = vmatpush1.msra.mxu0 %v545
  %547 = vmatprep.subr.mxu0 0.0
  %v548 = vand.u32 %v51, 4294901760
  %v549 = vsub.f32 %v51, %v548
  %550 = vmatpush1.msra.mxu0 %v549
  %551 = vmatprep.subr.mxu0 0.0
  %v552 = vand.u32 %v52, 4294901760
  %v553 = vsub.f32 %v52, %v552
  %554 = vmatpush1.msra.mxu0 %v553
  %555 = vmatprep.subr.mxu0 0.0
  %v556 = vand.u32 %v53, 4294901760
  %v557 = vsub.f32 %v53, %v556
  %558 = vmatpush1.msra.mxu0 %v557
  %559 = vmatprep.subr.mxu0 0.0
  %v560 = vand.u32 %v54, 4294901760
  %v561 = vsub.f32 %v54, %v560
  %562 = vmatpush1.msra.mxu0 %v561
  %563 = vmatprep.subr.mxu0 0.0
  %v564 = vand.u32 %v55, 4294901760
  %v565 = vsub.f32 %v55, %v564
  %566 = vmatpush1.msra.mxu0 %v565
  %567 = vmatprep.subr.mxu0 0.0
  %v568 = vand.u32 %v56, 4294901760
  %v569 = vsub.f32 %v56, %v568
  %570 = vmatpush1.msra.mxu0 %v569
  %571 = vmatprep.subr.mxu0 0.0
  %v572 = vand.u32 %v57, 4294901760
  %v573 = vsub.f32 %v57, %v572
  %574 = vmatpush1.msra.mxu0 %v573
  %575 = vmatprep.subr.mxu0 0.0
  %v576 = vand.u32 %v58, 4294901760
  %v577 = vsub.f32 %v58, %v576
  %578 = vmatpush1.msra.mxu0 %v577
  %579 = vmatprep.subr.mxu0 0.0
  %v580 = vand.u32 %v59, 4294901760
  %v581 = vsub.f32 %v59, %v580
  %582 = vmatpush1.msra.mxu0 %v581
  %583 = vmatprep.subr.mxu0 0.0
  %v584 = vand.u32 %v60, 4294901760
  %v585 = vsub.f32 %v60, %v584
  %586 = vmatpush1.msra.mxu0 %v585
  %587 = vmatprep.subr.mxu0 0.0
  %v588 = vand.u32 %v61, 4294901760
  %v589 = vsub.f32 %v61, %v588
  %590 = vmatpush1.msra.mxu0 %v589
  %591 = vmatprep.subr.mxu0 0.0
  %v592 = vand.u32 %v62, 4294901760
  %v593 = vsub.f32 %v62, %v592
  %594 = vmatpush1.msra.mxu0 %v593
  %595 = vmatprep.subr.mxu0 0.0
  %v596 = vand.u32 %v63, 4294901760
  %v597 = vsub.f32 %v63, %v596
  %598 = vmatpush1.msra.mxu0 %v597
  %599 = vmatprep.subr.mxu0 0.0
  %v600 = vand.u32 %v64, 4294901760
  %v601 = vsub.f32 %v64, %v600
  %602 = vmatpush1.msra.mxu0 %v601
  %v603 = vand.u32 %v12, 4294901760
  %v604 = vsub.f32 %v12, %v603
  %605 = vmatprep.mubr.f32.mxu0 %v604
  %v606 = vand.u32 %v11, 4294901760
  %v607 = vsub.f32 %v11, %v606
  %608 = vmatmul.mubr.f32.gmra.mrb[0].mxu0 %v607
  %v609 = vpop.f32.mrb[0].mxu0
  %v610 = vadd.f32 %v451, %v609
  %v611 = vpop.f32.mrb[0].mxu0
  %v612 = vand.u32 %v14, 4294901760
  %v613 = vsub.f32 %v14, %v612
  %614 = vmatprep.mubr.f32.mxu0 %v613
  %v615 = vand.u32 %v13, 4294901760
  %v616 = vsub.f32 %v13, %v615
  %617 = vmatmul.mubr.f32.gmra.mrb[0].mxu0 %v616
  %v618 = vpop.f32.mrb[0].mxu0
  %v619 = vadd.f32 %v458, %v618
  %v620 = vpop.f32.mrb[0].mxu0
  %v621 = vand.u32 %v16, 4294901760
  %v622 = vsub.f32 %v16, %v621
  %623 = vmatprep.mubr.f32.mxu0 %v622
  %v624 = vand.u32 %v15, 4294901760
  %v625 = vsub.f32 %v15, %v624
  %626 = vmatmul.mubr.f32.gmra.mrb[0].mxu0 %v625
  %v627 = vpop.f32.mrb[0].mxu0
  %v628 = vadd.f32 %v465, %v627
  %v629 = vpop.f32.mrb[0].mxu0
  %v630 = vand.u32 %v18, 4294901760
  %v631 = vsub.f32 %v18, %v630
  %632 = vmatprep.mubr.f32.mxu0 %v631
  %v633 = vand.u32 %v17, 4294901760
  %v634 = vsub.f32 %v17, %v633
  %635 = vmatmul.mubr.f32.gmra.mrb[0].mxu0 %v634
  %v636 = vpop.f32.mrb[0].mxu0
  %v637 = vadd.f32 %v472, %v636
  %v638 = vpop.f32.mrb[0].mxu0
  %639 = vdwg.mxu0
  %640 = vmatprep.subr.mxu0 0.0
  %v641 = vand.u32 %v33, 4294901760
  %642 = vmatpush1.msra.mxu0 %v641
  %643 = vmatprep.subr.mxu0 0.0
  %v644 = vand.u32 %v34, 4294901760
  %645 = vmatpush1.msra.mxu0 %v644
  %646 = vmatprep.subr.mxu0 0.0
  %v647 = vand.u32 %v35, 4294901760
  %648 = vmatpush1.msra.mxu0 %v647
  %649 = vmatprep.subr.mxu0 0.0
  %v650 = vand.u32 %v36, 4294901760
  %651 = vmatpush1.msra.mxu0 %v650
  %652 = vmatprep.subr.mxu0 0.0
  %v653 = vand.u32 %v37, 4294901760
  %654 = vmatpush1.msra.mxu0 %v653
  %655 = vmatprep.subr.mxu0 0.0
  %v656 = vand.u32 %v38, 4294901760
  %657 = vmatpush1.msra.mxu0 %v656
  %658 = vmatprep.subr.mxu0 0.0
  %v659 = vand.u32 %v39, 4294901760
  %660 = vmatpush1.msra.mxu0 %v659
  %661 = vmatprep.subr.mxu0 0.0
  %v662 = vand.u32 %v40, 4294901760
  %663 = vmatpush1.msra.mxu0 %v662
  %664 = vmatprep.subr.mxu0 0.0
  %v665 = vand.u32 %v41, 4294901760
  %666 = vmatpush1.msra.mxu0 %v665
  %667 = vmatprep.subr.mxu0 0.0
  %v668 = vand.u32 %v42, 4294901760
  %669 = vmatpush1.msra.mxu0 %v668
  %670 = vmatprep.subr.mxu0 0.0
  %v671 = vand.u32 %v43, 4294901760
  %672 = vmatpush1.msra.mxu0 %v671
  %673 = vmatprep.subr.mxu0 0.0
  %v674 = vand.u32 %v44, 4294901760
  %675 = vmatpush1.msra.mxu0 %v674
  %676 = vmatprep.subr.mxu0 0.0
  %v677 = vand.u32 %v45, 4294901760
  %678 = vmatpush1.msra.mxu0 %v677
  %679 = vmatprep.subr.mxu0 0.0
  %v680 = vand.u32 %v46, 4294901760
  %681 = vmatpush1.msra.mxu0 %v680
  %682 = vmatprep.subr.mxu0 0.0
  %v683 = vand.u32 %v47, 4294901760
  %684 = vmatpush1.msra.mxu0 %v683
  %685 = vmatprep.subr.mxu0 0.0
  %v686 = vand.u32 %v48, 4294901760
  %687 = vmatpush1.msra.mxu0 %v686
  %688 = vmatprep.subr.mxu0 0.0
  %v689 = vand.u32 %v49, 4294901760
  %690 = vmatpush1.msra.mxu0 %v689
  %691 = vmatprep.subr.mxu0 0.0
  %v692 = vand.u32 %v50, 4294901760
  %693 = vmatpush1.msra.mxu0 %v692
  %694 = vmatprep.subr.mxu0 0.0
  %v695 = vand.u32 %v51, 4294901760
  %696 = vmatpush1.msra.mxu0 %v695
  %697 = vmatprep.subr.mxu0 0.0
  %v698 = vand.u32 %v52, 4294901760
  %699 = vmatpush1.msra.mxu0 %v698
  %700 = vmatprep.subr.mxu0 0.0
  %v701 = vand.u32 %v53, 4294901760
  %702 = vmatpush1.msra.mxu0 %v701
  %703 = vmatprep.subr.mxu0 0.0
  %v704 = vand.u32 %v54, 4294901760
  %705 = vmatpush1.msra.mxu0 %v704
  %706 = vmatprep.subr.mxu0 0.0
  %v707 = vand.u32 %v55, 4294901760
  %708 = vmatpush1.msra.mxu0 %v707
  %709 = vmatprep.subr.mxu0 0.0
  %v710 = vand.u32 %v56, 4294901760
  %711 = vmatpush1.msra.mxu0 %v710
  %712 = vmatprep.subr.mxu0 0.0
  %v713 = vand.u32 %v57, 4294901760
  %714 = vmatpush1.msra.mxu0 %v713
  %715 = vmatprep.subr.mxu0 0.0
  %v716 = vand.u32 %v58, 4294901760
  %717 = vmatpush1.msra.mxu0 %v716
  %718 = vmatprep.subr.mxu0 0.0
  %v719 = vand.u32 %v59, 4294901760
  %720 = vmatpush1.msra.mxu0 %v719
  %721 = vmatprep.subr.mxu0 0.0
  %v722 = vand.u32 %v60, 4294901760
  %723 = vmatpush1.msra.mxu0 %v722
  %724 = vmatprep.subr.mxu0 0.0
  %v725 = vand.u32 %v61, 4294901760
  %726 = vmatpush1.msra.mxu0 %v725
  %727 = vmatprep.subr.mxu0 0.0
  %v728 = vand.u32 %v62, 4294901760
  %729 = vmatpush1.msra.mxu0 %v728
  %730 = vmatprep.subr.mxu0 0.0
  %v731 = vand.u32 %v63, 4294901760
  %732 = vmatpush1.msra.mxu0 %v731
  %733 = vmatprep.subr.mxu0 0.0
  %v734 = vand.u32 %v64, 4294901760
  %735 = vmatpush1.msra.mxu0 %v734
  %v736 = vand.u32 %v12, 4294901760
  %v737 = vsub.f32 %v12, %v736
  %v738 = vand.u32 %v737, 4294901760
  %739 = vmatprep.mubr.f32.mxu0 %v738
  %v740 = vand.u32 %v11, 4294901760
  %v741 = vsub.f32 %v11, %v740
  %v742 = vand.u32 %v741, 4294901760
  %743 = vmatmul.mubr.f32.gmra.mrb[0].mxu0 %v742
  %v744 = vpop.f32.mrb[0].mxu0
  %v745 = vadd.f32 %v610, %v744
  %v746 = vpop.f32.mrb[0].mxu0
  %v747 = vand.u32 %v14, 4294901760
  %v748 = vsub.f32 %v14, %v747
  %v749 = vand.u32 %v748, 4294901760
  %750 = vmatprep.mubr.f32.mxu0 %v749
  %v751 = vand.u32 %v13, 4294901760
  %v752 = vsub.f32 %v13, %v751
  %v753 = vand.u32 %v752, 4294901760
  %754 = vmatmul.mubr.f32.gmra.mrb[0].mxu0 %v753
  %v755 = vpop.f32.mrb[0].mxu0
  %v756 = vadd.f32 %v619, %v755
  %v757 = vpop.f32.mrb[0].mxu0
  %v758 = vand.u32 %v16, 4294901760
  %v759 = vsub.f32 %v16, %v758
  %v760 = vand.u32 %v759, 4294901760
  %761 = vmatprep.mubr.f32.mxu0 %v760
  %v762 = vand.u32 %v15, 4294901760
  %v763 = vsub.f32 %v15, %v762
  %v764 = vand.u32 %v763, 4294901760
  %765 = vmatmul.mubr.f32.gmra.mrb[0].mxu0 %v764
  %v766 = vpop.f32.mrb[0].mxu0
  %v767 = vadd.f32 %v628, %v766
  %v768 = vpop.f32.mrb[0].mxu0
  %v769 = vand.u32 %v18, 4294901760
  %v770 = vsub.f32 %v18, %v769
  %v771 = vand.u32 %v770, 4294901760
  %772 = vmatprep.mubr.f32.mxu0 %v771
  %v773 = vand.u32 %v17, 4294901760
  %v774 = vsub.f32 %v17, %v773
  %v775 = vand.u32 %v774, 4294901760
  %776 = vmatmul.mubr.f32.gmra.mrb[0].mxu0 %v775
  %v777 = vpop.f32.mrb[0].mxu0
  %v778 = vadd.f32 %v637, %v777
  %v779 = vpop.f32.mrb[0].mxu0
  %780 = vdwg.mxu0
  %781 = vmatprep.subr.mxu0 0.0
  %v782 = vand.u32 %v33, 4294901760
  %v783 = vsub.f32 %v33, %v782
  %v784 = vand.u32 %v783, 4294901760
  %785 = vmatpush1.msra.mxu0 %v784
  %786 = vmatprep.subr.mxu0 0.0
  %v787 = vand.u32 %v34, 4294901760
  %v788 = vsub.f32 %v34, %v787
  %v789 = vand.u32 %v788, 4294901760
  %790 = vmatpush1.msra.mxu0 %v789
  %791 = vmatprep.subr.mxu0 0.0
  %v792 = vand.u32 %v35, 4294901760
  %v793 = vsub.f32 %v35, %v792
  %v794 = vand.u32 %v793, 4294901760
  %795 = vmatpush1.msra.mxu0 %v794
  %796 = vmatprep.subr.mxu0 0.0
  %v797 = vand.u32 %v36, 4294901760
  %v798 = vsub.f32 %v36, %v797
  %v799 = vand.u32 %v798, 4294901760
  %800 = vmatpush1.msra.mxu0 %v799
  %801 = vmatprep.subr.mxu0 0.0
  %v802 = vand.u32 %v37, 4294901760
  %v803 = vsub.f32 %v37, %v802
  %v804 = vand.u32 %v803, 4294901760
  %805 = vmatpush1.msra.mxu0 %v804
  %806 = vmatprep.subr.mxu0 0.0
  %v807 = vand.u32 %v38, 4294901760
  %v808 = vsub.f32 %v38, %v807
  %v809 = vand.u32 %v808, 4294901760
  %810 = vmatpush1.msra.mxu0 %v809
  %811 = vmatprep.subr.mxu0 0.0
  %v812 = vand.u32 %v39, 4294901760
  %v813 = vsub.f32 %v39, %v812
  %v814 = vand.u32 %v813, 4294901760
  %815 = vmatpush1.msra.mxu0 %v814
  %816 = vmatprep.subr.mxu0 0.0
  %v817 = vand.u32 %v40, 4294901760
  %v818 = vsub.f32 %v40, %v817
  %v819 = vand.u32 %v818, 4294901760
  %820 = vmatpush1.msra.mxu0 %v819
  %821 = vmatprep.subr.mxu0 0.0
  %v822 = vand.u32 %v41, 4294901760
  %v823 = vsub.f32 %v41, %v822
  %v824 = vand.u32 %v823, 4294901760
  %825 = vmatpush1.msra.mxu0 %v824
  %826 = vmatprep.subr.mxu0 0.0
  %v827 = vand.u32 %v42, 4294901760
  %v828 = vsub.f32 %v42, %v827
  %v829 = vand.u32 %v828, 4294901760
  %830 = vmatpush1.msra.mxu0 %v829
  %831 = vmatprep.subr.mxu0 0.0
  %v832 = vand.u32 %v43, 4294901760
  %v833 = vsub.f32 %v43, %v832
  %v834 = vand.u32 %v833, 4294901760
  %835 = vmatpush1.msra.mxu0 %v834
  %836 = vmatprep.subr.mxu0 0.0
  %v837 = vand.u32 %v44, 4294901760
  %v838 = vsub.f32 %v44, %v837
  %v839 = vand.u32 %v838, 4294901760
  %840 = vmatpush1.msra.mxu0 %v839
  %841 = vmatprep.subr.mxu0 0.0
  %v842 = vand.u32 %v45, 4294901760
  %v843 = vsub.f32 %v45, %v842
  %v844 = vand.u32 %v843, 4294901760
  %845 = vmatpush1.msra.mxu0 %v844
  %846 = vmatprep.subr.mxu0 0.0
  %v847 = vand.u32 %v46, 4294901760
  %v848 = vsub.f32 %v46, %v847
  %v849 = vand.u32 %v848, 4294901760
  %850 = vmatpush1.msra.mxu0 %v849
  %851 = vmatprep.subr.mxu0 0.0
  %v852 = vand.u32 %v47, 4294901760
  %v853 = vsub.f32 %v47, %v852
  %v854 = vand.u32 %v853, 4294901760
  %855 = vmatpush1.msra.mxu0 %v854
  %856 = vmatprep.subr.mxu0 0.0
  %v857 = vand.u32 %v48, 4294901760
  %v858 = vsub.f32 %v48, %v857
  %v859 = vand.u32 %v858, 4294901760
  %860 = vmatpush1.msra.mxu0 %v859
  %861 = vmatprep.subr.mxu0 0.0
  %v862 = vand.u32 %v49, 4294901760
  %v863 = vsub.f32 %v49, %v862
  %v864 = vand.u32 %v863, 4294901760
  %865 = vmatpush1.msra.mxu0 %v864
  %866 = vmatprep.subr.mxu0 0.0
  %v867 = vand.u32 %v50, 4294901760
  %v868 = vsub.f32 %v50, %v867
  %v869 = vand.u32 %v868, 4294901760
  %870 = vmatpush1.msra.mxu0 %v869
  %871 = vmatprep.subr.mxu0 0.0
  %v872 = vand.u32 %v51, 4294901760
  %v873 = vsub.f32 %v51, %v872
  %v874 = vand.u32 %v873, 4294901760
  %875 = vmatpush1.msra.mxu0 %v874
  %876 = vmatprep.subr.mxu0 0.0
  %v877 = vand.u32 %v52, 4294901760
  %v878 = vsub.f32 %v52, %v877
  %v879 = vand.u32 %v878, 4294901760
  %880 = vmatpush1.msra.mxu0 %v879
  %881 = vmatprep.subr.mxu0 0.0
  %v882 = vand.u32 %v53, 4294901760
  %v883 = vsub.f32 %v53, %v882
  %v884 = vand.u32 %v883, 4294901760
  %885 = vmatpush1.msra.mxu0 %v884
  %886 = vmatprep.subr.mxu0 0.0
  %v887 = vand.u32 %v54, 4294901760
  %v888 = vsub.f32 %v54, %v887
  %v889 = vand.u32 %v888, 4294901760
  %890 = vmatpush1.msra.mxu0 %v889
  %891 = vmatprep.subr.mxu0 0.0
  %v892 = vand.u32 %v55, 4294901760
  %v893 = vsub.f32 %v55, %v892
  %v894 = vand.u32 %v893, 4294901760
  %895 = vmatpush1.msra.mxu0 %v894
  %896 = vmatprep.subr.mxu0 0.0
  %v897 = vand.u32 %v56, 4294901760
  %v898 = vsub.f32 %v56, %v897
  %v899 = vand.u32 %v898, 4294901760
  %900 = vmatpush1.msra.mxu0 %v899
  %901 = vmatprep.subr.mxu0 0.0
  %v902 = vand.u32 %v57, 4294901760
  %v903 = vsub.f32 %v57, %v902
  %v904 = vand.u32 %v903, 4294901760
  %905 = vmatpush1.msra.mxu0 %v904
  %906 = vmatprep.subr.mxu0 0.0
  %v907 = vand.u32 %v58, 4294901760
  %v908 = vsub.f32 %v58, %v907
  %v909 = vand.u32 %v908, 4294901760
  %910 = vmatpush1.msra.mxu0 %v909
  %911 = vmatprep.subr.mxu0 0.0
  %v912 = vand.u32 %v59, 4294901760
  %v913 = vsub.f32 %v59, %v912
  %v914 = vand.u32 %v913, 4294901760
  %915 = vmatpush1.msra.mxu0 %v914
  %916 = vmatprep.subr.mxu0 0.0
  %v917 = vand.u32 %v60, 4294901760
  %v918 = vsub.f32 %v60, %v917
  %v919 = vand.u32 %v918, 4294901760
  %920 = vmatpush1.msra.mxu0 %v919
  %921 = vmatprep.subr.mxu0 0.0
  %v922 = vand.u32 %v61, 4294901760
  %v923 = vsub.f32 %v61, %v922
  %v924 = vand.u32 %v923, 4294901760
  %925 = vmatpush1.msra.mxu0 %v924
  %926 = vmatprep.subr.mxu0 0.0
  %v927 = vand.u32 %v62, 4294901760
  %v928 = vsub.f32 %v62, %v927
  %v929 = vand.u32 %v928, 4294901760
  %930 = vmatpush1.msra.mxu0 %v929
  %931 = vmatprep.subr.mxu0 0.0
  %v932 = vand.u32 %v63, 4294901760
  %v933 = vsub.f32 %v63, %v932
  %v934 = vand.u32 %v933, 4294901760
  %935 = vmatpush1.msra.mxu0 %v934
  %936 = vmatprep.subr.mxu0 0.0
  %v937 = vand.u32 %v64, 4294901760
  %v938 = vsub.f32 %v64, %v937
  %v939 = vand.u32 %v938, 4294901760
  %940 = vmatpush1.msra.mxu0 %v939
  %v941 = vand.u32 %v12, 4294901760
  %942 = vmatprep.mubr.f32.mxu0 %v941
  %v943 = vand.u32 %v11, 4294901760
  %944 = vmatmul.mubr.f32.gmra.mrb[0].mxu0 %v943
  %v945 = vpop.f32.mrb[0].mxu0
  %v946 = vadd.f32 %v745, %v945
  %v947 = vpop.f32.mrb[0].mxu0
  %v948 = vand.u32 %v14, 4294901760
  %949 = vmatprep.mubr.f32.mxu0 %v948
  %v950 = vand.u32 %v13, 4294901760
  %951 = vmatmul.mubr.f32.gmra.mrb[0].mxu0 %v950
  %v952 = vpop.f32.mrb[0].mxu0
  %v953 = vadd.f32 %v756, %v952
  %v954 = vpop.f32.mrb[0].mxu0
  %v955 = vand.u32 %v16, 4294901760
  %956 = vmatprep.mubr.f32.mxu0 %v955
  %v957 = vand.u32 %v15, 4294901760
  %958 = vmatmul.mubr.f32.gmra.mrb[0].mxu0 %v957
  %v959 = vpop.f32.mrb[0].mxu0
  %v960 = vadd.f32 %v767, %v959
  %v961 = vpop.f32.mrb[0].mxu0
  %v962 = vand.u32 %v18, 4294901760
  %963 = vmatprep.mubr.f32.mxu0 %v962
  %v964 = vand.u32 %v17, 4294901760
  %965 = vmatmul.mubr.f32.gmra.mrb[0].mxu0 %v964
  %v966 = vpop.f32.mrb[0].mxu0
  %v967 = vadd.f32 %v778, %v966
  %v968 = vpop.f32.mrb[0].mxu0
  %969 = vdwg.mxu0
  %970 = vmatprep.subr.mxu0 0.0
  %v971 = vand.u32 %v33, 4294901760
  %972 = vmatpush1.msra.mxu0 %v971
  %973 = vmatprep.subr.mxu0 0.0
  %v974 = vand.u32 %v34, 4294901760
  %975 = vmatpush1.msra.mxu0 %v974
  %976 = vmatprep.subr.mxu0 0.0
  %v977 = vand.u32 %v35, 4294901760
  %978 = vmatpush1.msra.mxu0 %v977
  %979 = vmatprep.subr.mxu0 0.0
  %v980 = vand.u32 %v36, 4294901760
  %981 = vmatpush1.msra.mxu0 %v980
  %982 = vmatprep.subr.mxu0 0.0
  %v983 = vand.u32 %v37, 4294901760
  %984 = vmatpush1.msra.mxu0 %v983
  %985 = vmatprep.subr.mxu0 0.0
  %v986 = vand.u32 %v38, 4294901760
  %987 = vmatpush1.msra.mxu0 %v986
  %988 = vmatprep.subr.mxu0 0.0
  %v989 = vand.u32 %v39, 4294901760
  %990 = vmatpush1.msra.mxu0 %v989
  %991 = vmatprep.subr.mxu0 0.0
  %v992 = vand.u32 %v40, 4294901760
  %993 = vmatpush1.msra.mxu0 %v992
  %994 = vmatprep.subr.mxu0 0.0
  %v995 = vand.u32 %v41, 4294901760
  %996 = vmatpush1.msra.mxu0 %v995
  %997 = vmatprep.subr.mxu0 0.0
  %v998 = vand.u32 %v42, 4294901760
  %999 = vmatpush1.msra.mxu0 %v998
  %1000 = vmatprep.subr.mxu0 0.0
  %v1001 = vand.u32 %v43, 4294901760
  %1002 = vmatpush1.msra.mxu0 %v1001
  %1003 = vmatprep.subr.mxu0 0.0
  %v1004 = vand.u32 %v44, 4294901760
  %1005 = vmatpush1.msra.mxu0 %v1004
  %1006 = vmatprep.subr.mxu0 0.0
  %v1007 = vand.u32 %v45, 4294901760
  %1008 = vmatpush1.msra.mxu0 %v1007
  %1009 = vmatprep.subr.mxu0 0.0
  %v1010 = vand.u32 %v46, 4294901760
  %1011 = vmatpush1.msra.mxu0 %v1010
  %1012 = vmatprep.subr.mxu0 0.0
  %v1013 = vand.u32 %v47, 4294901760
  %1014 = vmatpush1.msra.mxu0 %v1013
  %1015 = vmatprep.subr.mxu0 0.0
  %v1016 = vand.u32 %v48, 4294901760
  %1017 = vmatpush1.msra.mxu0 %v1016
  %1018 = vmatprep.subr.mxu0 0.0
  %v1019 = vand.u32 %v49, 4294901760
  %1020 = vmatpush1.msra.mxu0 %v1019
  %1021 = vmatprep.subr.mxu0 0.0
  %v1022 = vand.u32 %v50, 4294901760
  %1023 = vmatpush1.msra.mxu0 %v1022
  %1024 = vmatprep.subr.mxu0 0.0
  %v1025 = vand.u32 %v51, 4294901760
  %1026 = vmatpush1.msra.mxu0 %v1025
  %1027 = vmatprep.subr.mxu0 0.0
  %v1028 = vand.u32 %v52, 4294901760
  %1029 = vmatpush1.msra.mxu0 %v1028
  %1030 = vmatprep.subr.mxu0 0.0
  %v1031 = vand.u32 %v53, 4294901760
  %1032 = vmatpush1.msra.mxu0 %v1031
  %1033 = vmatprep.subr.mxu0 0.0
  %v1034 = vand.u32 %v54, 4294901760
  %1035 = vmatpush1.msra.mxu0 %v1034
  %1036 = vmatprep.subr.mxu0 0.0
  %v1037 = vand.u32 %v55, 4294901760
  %1038 = vmatpush1.msra.mxu0 %v1037
  %1039 = vmatprep.subr.mxu0 0.0
  %v1040 = vand.u32 %v56, 4294901760
  %1041 = vmatpush1.msra.mxu0 %v1040
  %1042 = vmatprep.subr.mxu0 0.0
  %v1043 = vand.u32 %v57, 4294901760
  %1044 = vmatpush1.msra.mxu0 %v1043
  %1045 = vmatprep.subr.mxu0 0.0
  %v1046 = vand.u32 %v58, 4294901760
  %1047 = vmatpush1.msra.mxu0 %v1046
  %1048 = vmatprep.subr.mxu0 0.0
  %v1049 = vand.u32 %v59, 4294901760
  %1050 = vmatpush1.msra.mxu0 %v1049
  %1051 = vmatprep.subr.mxu0 0.0
  %v1052 = vand.u32 %v60, 4294901760
  %1053 = vmatpush1.msra.mxu0 %v1052
  %1054 = vmatprep.subr.mxu0 0.0
  %v1055 = vand.u32 %v61, 4294901760
  %1056 = vmatpush1.msra.mxu0 %v1055
  %1057 = vmatprep.subr.mxu0 0.0
  %v1058 = vand.u32 %v62, 4294901760
  %1059 = vmatpush1.msra.mxu0 %v1058
  %1060 = vmatprep.subr.mxu0 0.0
  %v1061 = vand.u32 %v63, 4294901760
  %1062 = vmatpush1.msra.mxu0 %v1061
  %1063 = vmatprep.subr.mxu0 0.0
  %v1064 = vand.u32 %v64, 4294901760
  %1065 = vmatpush1.msra.mxu0 %v1064
  %v1066 = vand.u32 %v12, 4294901760
  %1067 = vmatprep.mubr.f32.mxu0 %v1066
  %v1068 = vand.u32 %v11, 4294901760
  %1069 = vmatmul.mubr.f32.gmra.mrb[0].mxu0 %v1068
  %v1070 = vpop.f32.mrb[0].mxu0
  %v1071 = vadd.f32 %v946, %v1070
  %v1072 = vpop.f32.mrb[0].mxu0
  %v1073 = vand.u32 %v14, 4294901760
  %1074 = vmatprep.mubr.f32.mxu0 %v1073
  %v1075 = vand.u32 %v13, 4294901760
  %1076 = vmatmul.mubr.f32.gmra.mrb[0].mxu0 %v1075
  %v1077 = vpop.f32.mrb[0].mxu0
  %v1078 = vadd.f32 %v953, %v1077
  %v1079 = vpop.f32.mrb[0].mxu0
  %v1080 = vand.u32 %v16, 4294901760
  %1081 = vmatprep.mubr.f32.mxu0 %v1080
  %v1082 = vand.u32 %v15, 4294901760
  %1083 = vmatmul.mubr.f32.gmra.mrb[0].mxu0 %v1082
  %v1084 = vpop.f32.mrb[0].mxu0
  %v1085 = vadd.f32 %v960, %v1084
  %v1086 = vpop.f32.mrb[0].mxu0
  %v1087 = vand.u32 %v18, 4294901760
  %1088 = vmatprep.mubr.f32.mxu0 %v1087
  %v1089 = vand.u32 %v17, 4294901760
  %1090 = vmatmul.mubr.f32.gmra.mrb[0].mxu0 %v1089
  %v1091 = vpop.f32.mrb[0].mxu0
  %v1092 = vadd.f32 %v967, %v1091
  %v1093 = vpop.f32.mrb[0].mxu0
  %1094 = vdwg.mxu0
  %1096 = vrot.lane.b32.xlu0 %v1071, 9
  %v1097 = vpop.permute.xlu0 %1096
  %vm1099 = vcmask 72704
  %v1100 = vsel %vm1099, 0.0, %v1097
  %v1101 = vadd.s32 %v32, 4294967295
  %vm1102 = vcmp.ge.s32.totalorder %v1101, 0
  %vm1103 = vcmp.lt.s32.totalorder %v1101, 8
  %vm1104 = vmand %vm1102, %vm1103
  %v1105 = vsel %vm1104, 1, 0
  %vm1106 = vcmp.eq.s32.totalorder %v1105, 1
  %v1107 = vsel %vm1106, %v1100, 0.0
  %v1108 = vadd.f32 %v1107, 0.0
  %v1109 = vrot.slane %v1071, 3
  %1110 = vrot.lane.b32.xlu0 %v1109, 8
  %v1111 = vpop.permute.xlu0 %1110
  %vm1113 = vcmask 64512
  %v1114 = vsel %vm1113, 0.0, %v1111
  %v1115 = vadd.f32 %v1108, %v1114
  %vm1117 = vcmask 1041408
  %v1118 = vrot.slane %v1071, 6
  %v1119 = vrot.slane %v1078, 6
  %v1120 = vsel %vm1117, %v1118, %v1119
  %1121 = vrot.lane.b32.xlu0 %v1120, 7
  %v1122 = vpop.permute.xlu0 %1121
  %vm1124 = vcmask 56320
  %v1125 = vsel %vm1124, 0.0, %v1122
  %v1126 = vadd.s32 %v32, 1
  %vm1127 = vcmp.ge.s32.totalorder %v1126, 0
  %vm1128 = vcmp.lt.s32.totalorder %v1126, 8
  %vm1129 = vmand %vm1127, %vm1128
  %v1130 = vsel %vm1129, 1, 0
  %vm1131 = vcmp.eq.s32.totalorder %v1130, 1
  %v1132 = vsel %vm1131, %v1125, 0.0
  %v1133 = vadd.f32 %v1115, %v1132
  %v1134 = vrot.slane %v1078, 1
  %1135 = vrot.lane.b32.xlu0 %v1134, 1
  %v1136 = vpop.permute.xlu0 %1135
  %vm1138 = vcmask 7168
  %v1139 = vsel %vm1138, 0.0, %v1136
  %v1140 = vsel %vm1106, %v1139, 0.0
  %v1141 = vadd.f32 %v1133, %v1140
  %v1142 = vrot.slane %v1078, 4
  %v1144 = vadd.f32 %v1141, %v1142
  %1146 = vrot.lane.b32.xlu0 %v1078, 127
  %v1147 = vpop.permute.xlu0 %1146
  %1148 = vrot.lane.b32.xlu0 %v1085, 127
  %v1149 = vpop.permute.xlu0 %1148
  %vm1152 = vcmask 515072
  %v1153 = vsel %vm1152, %v1147, 0.0
  %v1154 = vsel %vm1152, %v1149, 0.0
  %v1155 = vsel %vm1131, %v1153, 0.0
  %v1156 = vsel %vm1131, %v1154, 0.0
  %vm1159 = vcmask 1040384
  %v1160 = vrot.slane %v1155, 7
  %v1161 = vrot.slane %v1156, 7
  %v1162 = vsel %vm1159, %v1160, %v1161
  %v1164 = vadd.f32 %v1144, %v1162
  %1165 = vrot.lane.b32.xlu0 %v1085, 121
  %v1166 = vpop.permute.xlu0 %1165
  %vm1168 = vcmask 465920
  %v1169 = vsel %vm1168, %v1166, 0.0
  %v1170 = vsel %vm1106, %v1169, 0.0
  %v1172 = vrot.slane %v1170, 2
  %v1174 = vadd.f32 %v1164, %v1172
  %1175 = vrot.lane.b32.xlu0 %v1085, 120
  %v1176 = vpop.permute.xlu0 %1175
  %vm1178 = vcmask 457728
  %v1179 = vsel %vm1178, %v1176, 0.0
  %v1181 = vrot.slane %v1179, 5
  %v1183 = vadd.f32 %v1174, %v1181
  %1185 = vrot.lane.b32.xlu0 %v1092, 119
  %v1186 = vpop.permute.xlu0 %1185
  %vm1188 = vcmask 449536
  %v1189 = vsel %vm1188, %v1186, 0.0
  %v1190 = vsel %vm1131, %v1189, 0.0
  %v1191 = vadd.f32 %v1183, %v1190
  %vm1192 = vcmask 518144
  %1193 = vst.msk [vmem:[%s2] sm:$0x7] %vm1192, %v1191
  %s1194 = scalar_lea.vmem %s0, 256
  %v1195 = vld [vmem:[%s1194] sm:$0xff]
  %v1196 = vld [vmem:[%s1194 + $0x8] sm:$0xff]
  %v1197 = vld [vmem:[%s1194 + $0x10] sm:$0xff]
  %v1198 = vld [vmem:[%s1194 + $0x18] sm:$0xff]
  %v1199 = vld [vmem:[%s1194 + $0x20] sm:$0xff]
  %v1200 = vld [vmem:[%s1194 + $0x28] sm:$0xff]
  %v1201 = vld [vmem:[%s1194 + $0x30] sm:$0xff]
  %v1202 = vld [vmem:[%s1194 + $0x38] sm:$0xff]
  %v1203 = vld [vmem:[%s1194 + $0x40] sm:$0xff]
  %v1204 = vld [vmem:[%s1194 + $0x48] sm:$0xff]
  %v1205 = vld [vmem:[%s1194 + $0x50] sm:$0xff]
  %v1206 = vld [vmem:[%s1194 + $0x58] sm:$0xff]
  %v1207 = vld [vmem:[%s1194 + $0x60] sm:$0xff]
  %v1208 = vld [vmem:[%s1194 + $0x68] sm:$0xff]
  %v1209 = vld [vmem:[%s1194 + $0x70] sm:$0xff]
  %v1210 = vld [vmem:[%s1194 + $0x78] sm:$0xff]
  %v1211 = vld [vmem:[%s1194 + $0x80] sm:$0xff]
  %v1212 = vld [vmem:[%s1194 + $0x88] sm:$0xff]
  %v1213 = vld [vmem:[%s1194 + $0x90] sm:$0xff]
  %v1214 = vld [vmem:[%s1194 + $0x98] sm:$0xff]
  %v1215 = vld [vmem:[%s1194 + $0xa0] sm:$0xff]
  %v1216 = vld [vmem:[%s1194 + $0xa8] sm:$0xff]
  %v1217 = vld [vmem:[%s1194 + $0xb0] sm:$0xff]
  %v1218 = vld [vmem:[%s1194 + $0xb8] sm:$0xff]
  %v1219 = vld [vmem:[%s1194 + $0xc0] sm:$0xff]
  %v1220 = vld [vmem:[%s1194 + $0xc8] sm:$0xff]
  %v1221 = vld [vmem:[%s1194 + $0xd0] sm:$0xff]
  %v1222 = vld [vmem:[%s1194 + $0xd8] sm:$0xff]
  %v1223 = vld [vmem:[%s1194 + $0xe0] sm:$0xff]
  %v1224 = vld [vmem:[%s1194 + $0xe8] sm:$0xff]
  %v1225 = vld [vmem:[%s1194 + $0xf0] sm:$0xff]
  %v1226 = vld [vmem:[%s1194 + $0xf8] sm:$0xff]
  %1227 = vmatprep.subr.mxu0 0.0
  %v1228 = vand.u32 %v1195, 4294901760
  %1229 = vmatpush1.msra.mxu0 %v1228
  %1230 = vmatprep.subr.mxu0 0.0
  %v1231 = vand.u32 %v1196, 4294901760
  %1232 = vmatpush1.msra.mxu0 %v1231
  %1233 = vmatprep.subr.mxu0 0.0
  %v1234 = vand.u32 %v1197, 4294901760
  %1235 = vmatpush1.msra.mxu0 %v1234
  %1236 = vmatprep.subr.mxu0 0.0
  %v1237 = vand.u32 %v1198, 4294901760
  %1238 = vmatpush1.msra.mxu0 %v1237
  %1239 = vmatprep.subr.mxu0 0.0
  %v1240 = vand.u32 %v1199, 4294901760
  %1241 = vmatpush1.msra.mxu0 %v1240
  %1242 = vmatprep.subr.mxu0 0.0
  %v1243 = vand.u32 %v1200, 4294901760
  %1244 = vmatpush1.msra.mxu0 %v1243
  %1245 = vmatprep.subr.mxu0 0.0
  %v1246 = vand.u32 %v1201, 4294901760
  %1247 = vmatpush1.msra.mxu0 %v1246
  %1248 = vmatprep.subr.mxu0 0.0
  %v1249 = vand.u32 %v1202, 4294901760
  %1250 = vmatpush1.msra.mxu0 %v1249
  %1251 = vmatprep.subr.mxu0 0.0
  %v1252 = vand.u32 %v1203, 4294901760
  %1253 = vmatpush1.msra.mxu0 %v1252
  %1254 = vmatprep.subr.mxu0 0.0
  %v1255 = vand.u32 %v1204, 4294901760
  %1256 = vmatpush1.msra.mxu0 %v1255
  %1257 = vmatprep.subr.mxu0 0.0
  %v1258 = vand.u32 %v1205, 4294901760
  %1259 = vmatpush1.msra.mxu0 %v1258
  %1260 = vmatprep.subr.mxu0 0.0
  %v1261 = vand.u32 %v1206, 4294901760
  %1262 = vmatpush1.msra.mxu0 %v1261
  %1263 = vmatprep.subr.mxu0 0.0
  %v1264 = vand.u32 %v1207, 4294901760
  %1265 = vmatpush1.msra.mxu0 %v1264
  %1266 = vmatprep.subr.mxu0 0.0
  %v1267 = vand.u32 %v1208, 4294901760
  %1268 = vmatpush1.msra.mxu0 %v1267
  %1269 = vmatprep.subr.mxu0 0.0
  %v1270 = vand.u32 %v1209, 4294901760
  %1271 = vmatpush1.msra.mxu0 %v1270
  %1272 = vmatprep.subr.mxu0 0.0
  %v1273 = vand.u32 %v1210, 4294901760
  %1274 = vmatpush1.msra.mxu0 %v1273
  %1275 = vmatprep.subr.mxu0 0.0
  %v1276 = vand.u32 %v1211, 4294901760
  %1277 = vmatpush1.msra.mxu0 %v1276
  %1278 = vmatprep.subr.mxu0 0.0
  %v1279 = vand.u32 %v1212, 4294901760
  %1280 = vmatpush1.msra.mxu0 %v1279
  %1281 = vmatprep.subr.mxu0 0.0
  %v1282 = vand.u32 %v1213, 4294901760
  %1283 = vmatpush1.msra.mxu0 %v1282
  %1284 = vmatprep.subr.mxu0 0.0
  %v1285 = vand.u32 %v1214, 4294901760
  %1286 = vmatpush1.msra.mxu0 %v1285
  %1287 = vmatprep.subr.mxu0 0.0
  %v1288 = vand.u32 %v1215, 4294901760
  %1289 = vmatpush1.msra.mxu0 %v1288
  %1290 = vmatprep.subr.mxu0 0.0
  %v1291 = vand.u32 %v1216, 4294901760
  %1292 = vmatpush1.msra.mxu0 %v1291
  %1293 = vmatprep.subr.mxu0 0.0
  %v1294 = vand.u32 %v1217, 4294901760
  %1295 = vmatpush1.msra.mxu0 %v1294
  %1296 = vmatprep.subr.mxu0 0.0
  %v1297 = vand.u32 %v1218, 4294901760
  %1298 = vmatpush1.msra.mxu0 %v1297
  %1299 = vmatprep.subr.mxu0 0.0
  %v1300 = vand.u32 %v1219, 4294901760
  %1301 = vmatpush1.msra.mxu0 %v1300
  %1302 = vmatprep.subr.mxu0 0.0
  %v1303 = vand.u32 %v1220, 4294901760
  %1304 = vmatpush1.msra.mxu0 %v1303
  %1305 = vmatprep.subr.mxu0 0.0
  %v1306 = vand.u32 %v1221, 4294901760
  %1307 = vmatpush1.msra.mxu0 %v1306
  %1308 = vmatprep.subr.mxu0 0.0
  %v1309 = vand.u32 %v1222, 4294901760
  %1310 = vmatpush1.msra.mxu0 %v1309
  %1311 = vmatprep.subr.mxu0 0.0
  %v1312 = vand.u32 %v1223, 4294901760
  %1313 = vmatpush1.msra.mxu0 %v1312
  %1314 = vmatprep.subr.mxu0 0.0
  %v1315 = vand.u32 %v1224, 4294901760
  %1316 = vmatpush1.msra.mxu0 %v1315
  %1317 = vmatprep.subr.mxu0 0.0
  %v1318 = vand.u32 %v1225, 4294901760
  %1319 = vmatpush1.msra.mxu0 %v1318
  %1320 = vmatprep.subr.mxu0 0.0
  %v1321 = vand.u32 %v1226, 4294901760
  %1322 = vmatpush1.msra.mxu0 %v1321
  %v1323 = vand.u32 %v12, 4294901760
  %v1324 = vsub.f32 %v12, %v1323
  %v1325 = vand.u32 %v1324, 4294901760
  %v1326 = vsub.f32 %v1324, %v1325
  %v1327 = vand.u32 %v1326, 4294901760
  %1328 = vmatprep.mubr.f32.mxu0 %v1327
  %v1329 = vand.u32 %v11, 4294901760
  %v1330 = vsub.f32 %v11, %v1329
  %v1331 = vand.u32 %v1330, 4294901760
  %v1332 = vsub.f32 %v1330, %v1331
  %v1333 = vand.u32 %v1332, 4294901760
  %1334 = vmatmul.mubr.f32.gmra.mrb[0].mxu0 %v1333
  %v1335 = vpop.f32.mrb[0].mxu0
  %v1336 = vadd.f32 0.0, %v1335
  %v1337 = vpop.f32.mrb[0].mxu0
  %v1338 = vand.u32 %v14, 4294901760
  %v1339 = vsub.f32 %v14, %v1338
  %v1340 = vand.u32 %v1339, 4294901760
  %v1341 = vsub.f32 %v1339, %v1340
  %v1342 = vand.u32 %v1341, 4294901760
  %1343 = vmatprep.mubr.f32.mxu0 %v1342
  %v1344 = vand.u32 %v13, 4294901760
  %v1345 = vsub.f32 %v13, %v1344
  %v1346 = vand.u32 %v1345, 4294901760
  %v1347 = vsub.f32 %v1345, %v1346
  %v1348 = vand.u32 %v1347, 4294901760
  %1349 = vmatmul.mubr.f32.gmra.mrb[0].mxu0 %v1348
  %v1350 = vpop.f32.mrb[0].mxu0
  %v1351 = vadd.f32 0.0, %v1350
  %v1352 = vpop.f32.mrb[0].mxu0
  %v1353 = vand.u32 %v16, 4294901760
  %v1354 = vsub.f32 %v16, %v1353
  %v1355 = vand.u32 %v1354, 4294901760
  %v1356 = vsub.f32 %v1354, %v1355
  %v1357 = vand.u32 %v1356, 4294901760
  %1358 = vmatprep.mubr.f32.mxu0 %v1357
  %v1359 = vand.u32 %v15, 4294901760
  %v1360 = vsub.f32 %v15, %v1359
  %v1361 = vand.u32 %v1360, 4294901760
  %v1362 = vsub.f32 %v1360, %v1361
  %v1363 = vand.u32 %v1362, 4294901760
  %1364 = vmatmul.mubr.f32.gmra.mrb[0].mxu0 %v1363
  %v1365 = vpop.f32.mrb[0].mxu0
  %v1366 = vadd.f32 0.0, %v1365
  %v1367 = vpop.f32.mrb[0].mxu0
  %v1368 = vand.u32 %v18, 4294901760
  %v1369 = vsub.f32 %v18, %v1368
  %v1370 = vand.u32 %v1369, 4294901760
  %v1371 = vsub.f32 %v1369, %v1370
  %v1372 = vand.u32 %v1371, 4294901760
  %1373 = vmatprep.mubr.f32.mxu0 %v1372
  %v1374 = vand.u32 %v17, 4294901760
  %v1375 = vsub.f32 %v17, %v1374
  %v1376 = vand.u32 %v1375, 4294901760
  %v1377 = vsub.f32 %v1375, %v1376
  %v1378 = vand.u32 %v1377, 4294901760
  %1379 = vmatmul.mubr.f32.gmra.mrb[0].mxu0 %v1378
  %v1380 = vpop.f32.mrb[0].mxu0
  %v1381 = vadd.f32 0.0, %v1380
  %v1382 = vpop.f32.mrb[0].mxu0
  %1383 = vdwg.mxu0
  %1384 = vmatprep.subr.mxu0 0.0
  %v1385 = vand.u32 %v1195, 4294901760
  %v1386 = vsub.f32 %v1195, %v1385
  %v1387 = vand.u32 %v1386, 4294901760
  %v1388 = vsub.f32 %v1386, %v1387
  %v1389 = vand.u32 %v1388, 4294901760
  %1390 = vmatpush1.msra.mxu0 %v1389
  %1391 = vmatprep.subr.mxu0 0.0
  %v1392 = vand.u32 %v1196, 4294901760
  %v1393 = vsub.f32 %v1196, %v1392
  %v1394 = vand.u32 %v1393, 4294901760
  %v1395 = vsub.f32 %v1393, %v1394
  %v1396 = vand.u32 %v1395, 4294901760
  %1397 = vmatpush1.msra.mxu0 %v1396
  %1398 = vmatprep.subr.mxu0 0.0
  %v1399 = vand.u32 %v1197, 4294901760
  %v1400 = vsub.f32 %v1197, %v1399
  %v1401 = vand.u32 %v1400, 4294901760
  %v1402 = vsub.f32 %v1400, %v1401
  %v1403 = vand.u32 %v1402, 4294901760
  %1404 = vmatpush1.msra.mxu0 %v1403
  %1405 = vmatprep.subr.mxu0 0.0
  %v1406 = vand.u32 %v1198, 4294901760
  %v1407 = vsub.f32 %v1198, %v1406
  %v1408 = vand.u32 %v1407, 4294901760
  %v1409 = vsub.f32 %v1407, %v1408
  %v1410 = vand.u32 %v1409, 4294901760
  %1411 = vmatpush1.msra.mxu0 %v1410
  %1412 = vmatprep.subr.mxu0 0.0
  %v1413 = vand.u32 %v1199, 4294901760
  %v1414 = vsub.f32 %v1199, %v1413
  %v1415 = vand.u32 %v1414, 4294901760
  %v1416 = vsub.f32 %v1414, %v1415
  %v1417 = vand.u32 %v1416, 4294901760
  %1418 = vmatpush1.msra.mxu0 %v1417
  %1419 = vmatprep.subr.mxu0 0.0
  %v1420 = vand.u32 %v1200, 4294901760
  %v1421 = vsub.f32 %v1200, %v1420
  %v1422 = vand.u32 %v1421, 4294901760
  %v1423 = vsub.f32 %v1421, %v1422
  %v1424 = vand.u32 %v1423, 4294901760
  %1425 = vmatpush1.msra.mxu0 %v1424
  %1426 = vmatprep.subr.mxu0 0.0
  %v1427 = vand.u32 %v1201, 4294901760
  %v1428 = vsub.f32 %v1201, %v1427
  %v1429 = vand.u32 %v1428, 4294901760
  %v1430 = vsub.f32 %v1428, %v1429
  %v1431 = vand.u32 %v1430, 4294901760
  %1432 = vmatpush1.msra.mxu0 %v1431
  %1433 = vmatprep.subr.mxu0 0.0
  %v1434 = vand.u32 %v1202, 4294901760
  %v1435 = vsub.f32 %v1202, %v1434
  %v1436 = vand.u32 %v1435, 4294901760
  %v1437 = vsub.f32 %v1435, %v1436
  %v1438 = vand.u32 %v1437, 4294901760
  %1439 = vmatpush1.msra.mxu0 %v1438
  %1440 = vmatprep.subr.mxu0 0.0
  %v1441 = vand.u32 %v1203, 4294901760
  %v1442 = vsub.f32 %v1203, %v1441
  %v1443 = vand.u32 %v1442, 4294901760
  %v1444 = vsub.f32 %v1442, %v1443
  %v1445 = vand.u32 %v1444, 4294901760
  %1446 = vmatpush1.msra.mxu0 %v1445
  %1447 = vmatprep.subr.mxu0 0.0
  %v1448 = vand.u32 %v1204, 4294901760
  %v1449 = vsub.f32 %v1204, %v1448
  %v1450 = vand.u32 %v1449, 4294901760
  %v1451 = vsub.f32 %v1449, %v1450
  %v1452 = vand.u32 %v1451, 4294901760
  %1453 = vmatpush1.msra.mxu0 %v1452
  %1454 = vmatprep.subr.mxu0 0.0
  %v1455 = vand.u32 %v1205, 4294901760
  %v1456 = vsub.f32 %v1205, %v1455
  %v1457 = vand.u32 %v1456, 4294901760
  %v1458 = vsub.f32 %v1456, %v1457
  %v1459 = vand.u32 %v1458, 4294901760
  %1460 = vmatpush1.msra.mxu0 %v1459
  %1461 = vmatprep.subr.mxu0 0.0
  %v1462 = vand.u32 %v1206, 4294901760
  %v1463 = vsub.f32 %v1206, %v1462
  %v1464 = vand.u32 %v1463, 4294901760
  %v1465 = vsub.f32 %v1463, %v1464
  %v1466 = vand.u32 %v1465, 4294901760
  %1467 = vmatpush1.msra.mxu0 %v1466
  %1468 = vmatprep.subr.mxu0 0.0
  %v1469 = vand.u32 %v1207, 4294901760
  %v1470 = vsub.f32 %v1207, %v1469
  %v1471 = vand.u32 %v1470, 4294901760
  %v1472 = vsub.f32 %v1470, %v1471
  %v1473 = vand.u32 %v1472, 4294901760
  %1474 = vmatpush1.msra.mxu0 %v1473
  %1475 = vmatprep.subr.mxu0 0.0
  %v1476 = vand.u32 %v1208, 4294901760
  %v1477 = vsub.f32 %v1208, %v1476
  %v1478 = vand.u32 %v1477, 4294901760
  %v1479 = vsub.f32 %v1477, %v1478
  %v1480 = vand.u32 %v1479, 4294901760
  %1481 = vmatpush1.msra.mxu0 %v1480
  %1482 = vmatprep.subr.mxu0 0.0
  %v1483 = vand.u32 %v1209, 4294901760
  %v1484 = vsub.f32 %v1209, %v1483
  %v1485 = vand.u32 %v1484, 4294901760
  %v1486 = vsub.f32 %v1484, %v1485
  %v1487 = vand.u32 %v1486, 4294901760
  %1488 = vmatpush1.msra.mxu0 %v1487
  %1489 = vmatprep.subr.mxu0 0.0
  %v1490 = vand.u32 %v1210, 4294901760
  %v1491 = vsub.f32 %v1210, %v1490
  %v1492 = vand.u32 %v1491, 4294901760
  %v1493 = vsub.f32 %v1491, %v1492
  %v1494 = vand.u32 %v1493, 4294901760
  %1495 = vmatpush1.msra.mxu0 %v1494
  %1496 = vmatprep.subr.mxu0 0.0
  %v1497 = vand.u32 %v1211, 4294901760
  %v1498 = vsub.f32 %v1211, %v1497
  %v1499 = vand.u32 %v1498, 4294901760
  %v1500 = vsub.f32 %v1498, %v1499
  %v1501 = vand.u32 %v1500, 4294901760
  %1502 = vmatpush1.msra.mxu0 %v1501
  %1503 = vmatprep.subr.mxu0 0.0
  %v1504 = vand.u32 %v1212, 4294901760
  %v1505 = vsub.f32 %v1212, %v1504
  %v1506 = vand.u32 %v1505, 4294901760
  %v1507 = vsub.f32 %v1505, %v1506
  %v1508 = vand.u32 %v1507, 4294901760
  %1509 = vmatpush1.msra.mxu0 %v1508
  %1510 = vmatprep.subr.mxu0 0.0
  %v1511 = vand.u32 %v1213, 4294901760
  %v1512 = vsub.f32 %v1213, %v1511
  %v1513 = vand.u32 %v1512, 4294901760
  %v1514 = vsub.f32 %v1512, %v1513
  %v1515 = vand.u32 %v1514, 4294901760
  %1516 = vmatpush1.msra.mxu0 %v1515
  %1517 = vmatprep.subr.mxu0 0.0
  %v1518 = vand.u32 %v1214, 4294901760
  %v1519 = vsub.f32 %v1214, %v1518
  %v1520 = vand.u32 %v1519, 4294901760
  %v1521 = vsub.f32 %v1519, %v1520
  %v1522 = vand.u32 %v1521, 4294901760
  %1523 = vmatpush1.msra.mxu0 %v1522
  %1524 = vmatprep.subr.mxu0 0.0
  %v1525 = vand.u32 %v1215, 4294901760
  %v1526 = vsub.f32 %v1215, %v1525
  %v1527 = vand.u32 %v1526, 4294901760
  %v1528 = vsub.f32 %v1526, %v1527
  %v1529 = vand.u32 %v1528, 4294901760
  %1530 = vmatpush1.msra.mxu0 %v1529
  %1531 = vmatprep.subr.mxu0 0.0
  %v1532 = vand.u32 %v1216, 4294901760
  %v1533 = vsub.f32 %v1216, %v1532
  %v1534 = vand.u32 %v1533, 4294901760
  %v1535 = vsub.f32 %v1533, %v1534
  %v1536 = vand.u32 %v1535, 4294901760
  %1537 = vmatpush1.msra.mxu0 %v1536
  %1538 = vmatprep.subr.mxu0 0.0
  %v1539 = vand.u32 %v1217, 4294901760
  %v1540 = vsub.f32 %v1217, %v1539
  %v1541 = vand.u32 %v1540, 4294901760
  %v1542 = vsub.f32 %v1540, %v1541
  %v1543 = vand.u32 %v1542, 4294901760
  %1544 = vmatpush1.msra.mxu0 %v1543
  %1545 = vmatprep.subr.mxu0 0.0
  %v1546 = vand.u32 %v1218, 4294901760
  %v1547 = vsub.f32 %v1218, %v1546
  %v1548 = vand.u32 %v1547, 4294901760
  %v1549 = vsub.f32 %v1547, %v1548
  %v1550 = vand.u32 %v1549, 4294901760
  %1551 = vmatpush1.msra.mxu0 %v1550
  %1552 = vmatprep.subr.mxu0 0.0
  %v1553 = vand.u32 %v1219, 4294901760
  %v1554 = vsub.f32 %v1219, %v1553
  %v1555 = vand.u32 %v1554, 4294901760
  %v1556 = vsub.f32 %v1554, %v1555
  %v1557 = vand.u32 %v1556, 4294901760
  %1558 = vmatpush1.msra.mxu0 %v1557
  %1559 = vmatprep.subr.mxu0 0.0
  %v1560 = vand.u32 %v1220, 4294901760
  %v1561 = vsub.f32 %v1220, %v1560
  %v1562 = vand.u32 %v1561, 4294901760
  %v1563 = vsub.f32 %v1561, %v1562
  %v1564 = vand.u32 %v1563, 4294901760
  %1565 = vmatpush1.msra.mxu0 %v1564
  %1566 = vmatprep.subr.mxu0 0.0
  %v1567 = vand.u32 %v1221, 4294901760
  %v1568 = vsub.f32 %v1221, %v1567
  %v1569 = vand.u32 %v1568, 4294901760
  %v1570 = vsub.f32 %v1568, %v1569
  %v1571 = vand.u32 %v1570, 4294901760
  %1572 = vmatpush1.msra.mxu0 %v1571
  %1573 = vmatprep.subr.mxu0 0.0
  %v1574 = vand.u32 %v1222, 4294901760
  %v1575 = vsub.f32 %v1222, %v1574
  %v1576 = vand.u32 %v1575, 4294901760
  %v1577 = vsub.f32 %v1575, %v1576
  %v1578 = vand.u32 %v1577, 4294901760
  %1579 = vmatpush1.msra.mxu0 %v1578
  %1580 = vmatprep.subr.mxu0 0.0
  %v1581 = vand.u32 %v1223, 4294901760
  %v1582 = vsub.f32 %v1223, %v1581
  %v1583 = vand.u32 %v1582, 4294901760
  %v1584 = vsub.f32 %v1582, %v1583
  %v1585 = vand.u32 %v1584, 4294901760
  %1586 = vmatpush1.msra.mxu0 %v1585
  %1587 = vmatprep.subr.mxu0 0.0
  %v1588 = vand.u32 %v1224, 4294901760
  %v1589 = vsub.f32 %v1224, %v1588
  %v1590 = vand.u32 %v1589, 4294901760
  %v1591 = vsub.f32 %v1589, %v1590
  %v1592 = vand.u32 %v1591, 4294901760
  %1593 = vmatpush1.msra.mxu0 %v1592
  %1594 = vmatprep.subr.mxu0 0.0
  %v1595 = vand.u32 %v1225, 4294901760
  %v1596 = vsub.f32 %v1225, %v1595
  %v1597 = vand.u32 %v1596, 4294901760
  %v1598 = vsub.f32 %v1596, %v1597
  %v1599 = vand.u32 %v1598, 4294901760
  %1600 = vmatpush1.msra.mxu0 %v1599
  %1601 = vmatprep.subr.mxu0 0.0
  %v1602 = vand.u32 %v1226, 4294901760
  %v1603 = vsub.f32 %v1226, %v1602
  %v1604 = vand.u32 %v1603, 4294901760
  %v1605 = vsub.f32 %v1603, %v1604
  %v1606 = vand.u32 %v1605, 4294901760
  %1607 = vmatpush1.msra.mxu0 %v1606
  %v1608 = vand.u32 %v12, 4294901760
  %1609 = vmatprep.mubr.f32.mxu0 %v1608
  %v1610 = vand.u32 %v11, 4294901760
  %1611 = vmatmul.mubr.f32.gmra.mrb[0].mxu0 %v1610
  %v1612 = vpop.f32.mrb[0].mxu0
  %v1613 = vadd.f32 %v1336, %v1612
  %v1614 = vpop.f32.mrb[0].mxu0
  %v1615 = vand.u32 %v14, 4294901760
  %1616 = vmatprep.mubr.f32.mxu0 %v1615
  %v1617 = vand.u32 %v13, 4294901760
  %1618 = vmatmul.mubr.f32.gmra.mrb[0].mxu0 %v1617
  %v1619 = vpop.f32.mrb[0].mxu0
  %v1620 = vadd.f32 %v1351, %v1619
  %v1621 = vpop.f32.mrb[0].mxu0
  %v1622 = vand.u32 %v16, 4294901760
  %1623 = vmatprep.mubr.f32.mxu0 %v1622
  %v1624 = vand.u32 %v15, 4294901760
  %1625 = vmatmul.mubr.f32.gmra.mrb[0].mxu0 %v1624
  %v1626 = vpop.f32.mrb[0].mxu0
  %v1627 = vadd.f32 %v1366, %v1626
  %v1628 = vpop.f32.mrb[0].mxu0
  %v1629 = vand.u32 %v18, 4294901760
  %1630 = vmatprep.mubr.f32.mxu0 %v1629
  %v1631 = vand.u32 %v17, 4294901760
  %1632 = vmatmul.mubr.f32.gmra.mrb[0].mxu0 %v1631
  %v1633 = vpop.f32.mrb[0].mxu0
  %v1634 = vadd.f32 %v1381, %v1633
  %v1635 = vpop.f32.mrb[0].mxu0
  %1636 = vdwg.mxu0
  %1637 = vmatprep.subr.mxu0 0.0
  %v1638 = vand.u32 %v1195, 4294901760
  %v1639 = vsub.f32 %v1195, %v1638
  %1640 = vmatpush1.msra.mxu0 %v1639
  %1641 = vmatprep.subr.mxu0 0.0
  %v1642 = vand.u32 %v1196, 4294901760
  %v1643 = vsub.f32 %v1196, %v1642
  %1644 = vmatpush1.msra.mxu0 %v1643
  %1645 = vmatprep.subr.mxu0 0.0
  %v1646 = vand.u32 %v1197, 4294901760
  %v1647 = vsub.f32 %v1197, %v1646
  %1648 = vmatpush1.msra.mxu0 %v1647
  %1649 = vmatprep.subr.mxu0 0.0
  %v1650 = vand.u32 %v1198, 4294901760
  %v1651 = vsub.f32 %v1198, %v1650
  %1652 = vmatpush1.msra.mxu0 %v1651
  %1653 = vmatprep.subr.mxu0 0.0
  %v1654 = vand.u32 %v1199, 4294901760
  %v1655 = vsub.f32 %v1199, %v1654
  %1656 = vmatpush1.msra.mxu0 %v1655
  %1657 = vmatprep.subr.mxu0 0.0
  %v1658 = vand.u32 %v1200, 4294901760
  %v1659 = vsub.f32 %v1200, %v1658
  %1660 = vmatpush1.msra.mxu0 %v1659
  %1661 = vmatprep.subr.mxu0 0.0
  %v1662 = vand.u32 %v1201, 4294901760
  %v1663 = vsub.f32 %v1201, %v1662
  %1664 = vmatpush1.msra.mxu0 %v1663
  %1665 = vmatprep.subr.mxu0 0.0
  %v1666 = vand.u32 %v1202, 4294901760
  %v1667 = vsub.f32 %v1202, %v1666
  %1668 = vmatpush1.msra.mxu0 %v1667
  %1669 = vmatprep.subr.mxu0 0.0
  %v1670 = vand.u32 %v1203, 4294901760
  %v1671 = vsub.f32 %v1203, %v1670
  %1672 = vmatpush1.msra.mxu0 %v1671
  %1673 = vmatprep.subr.mxu0 0.0
  %v1674 = vand.u32 %v1204, 4294901760
  %v1675 = vsub.f32 %v1204, %v1674
  %1676 = vmatpush1.msra.mxu0 %v1675
  %1677 = vmatprep.subr.mxu0 0.0
  %v1678 = vand.u32 %v1205, 4294901760
  %v1679 = vsub.f32 %v1205, %v1678
  %1680 = vmatpush1.msra.mxu0 %v1679
  %1681 = vmatprep.subr.mxu0 0.0
  %v1682 = vand.u32 %v1206, 4294901760
  %v1683 = vsub.f32 %v1206, %v1682
  %1684 = vmatpush1.msra.mxu0 %v1683
  %1685 = vmatprep.subr.mxu0 0.0
  %v1686 = vand.u32 %v1207, 4294901760
  %v1687 = vsub.f32 %v1207, %v1686
  %1688 = vmatpush1.msra.mxu0 %v1687
  %1689 = vmatprep.subr.mxu0 0.0
  %v1690 = vand.u32 %v1208, 4294901760
  %v1691 = vsub.f32 %v1208, %v1690
  %1692 = vmatpush1.msra.mxu0 %v1691
  %1693 = vmatprep.subr.mxu0 0.0
  %v1694 = vand.u32 %v1209, 4294901760
  %v1695 = vsub.f32 %v1209, %v1694
  %1696 = vmatpush1.msra.mxu0 %v1695
  %1697 = vmatprep.subr.mxu0 0.0
  %v1698 = vand.u32 %v1210, 4294901760
  %v1699 = vsub.f32 %v1210, %v1698
  %1700 = vmatpush1.msra.mxu0 %v1699
  %1701 = vmatprep.subr.mxu0 0.0
  %v1702 = vand.u32 %v1211, 4294901760
  %v1703 = vsub.f32 %v1211, %v1702
  %1704 = vmatpush1.msra.mxu0 %v1703
  %1705 = vmatprep.subr.mxu0 0.0
  %v1706 = vand.u32 %v1212, 4294901760
  %v1707 = vsub.f32 %v1212, %v1706
  %1708 = vmatpush1.msra.mxu0 %v1707
  %1709 = vmatprep.subr.mxu0 0.0
  %v1710 = vand.u32 %v1213, 4294901760
  %v1711 = vsub.f32 %v1213, %v1710
  %1712 = vmatpush1.msra.mxu0 %v1711
  %1713 = vmatprep.subr.mxu0 0.0
  %v1714 = vand.u32 %v1214, 4294901760
  %v1715 = vsub.f32 %v1214, %v1714
  %1716 = vmatpush1.msra.mxu0 %v1715
  %1717 = vmatprep.subr.mxu0 0.0
  %v1718 = vand.u32 %v1215, 4294901760
  %v1719 = vsub.f32 %v1215, %v1718
  %1720 = vmatpush1.msra.mxu0 %v1719
  %1721 = vmatprep.subr.mxu0 0.0
  %v1722 = vand.u32 %v1216, 4294901760
  %v1723 = vsub.f32 %v1216, %v1722
  %1724 = vmatpush1.msra.mxu0 %v1723
  %1725 = vmatprep.subr.mxu0 0.0
  %v1726 = vand.u32 %v1217, 4294901760
  %v1727 = vsub.f32 %v1217, %v1726
  %1728 = vmatpush1.msra.mxu0 %v1727
  %1729 = vmatprep.subr.mxu0 0.0
  %v1730 = vand.u32 %v1218, 4294901760
  %v1731 = vsub.f32 %v1218, %v1730
  %1732 = vmatpush1.msra.mxu0 %v1731
  %1733 = vmatprep.subr.mxu0 0.0
  %v1734 = vand.u32 %v1219, 4294901760
  %v1735 = vsub.f32 %v1219, %v1734
  %1736 = vmatpush1.msra.mxu0 %v1735
  %1737 = vmatprep.subr.mxu0 0.0
  %v1738 = vand.u32 %v1220, 4294901760
  %v1739 = vsub.f32 %v1220, %v1738
  %1740 = vmatpush1.msra.mxu0 %v1739
  %1741 = vmatprep.subr.mxu0 0.0
  %v1742 = vand.u32 %v1221, 4294901760
  %v1743 = vsub.f32 %v1221, %v1742
  %1744 = vmatpush1.msra.mxu0 %v1743
  %1745 = vmatprep.subr.mxu0 0.0
  %v1746 = vand.u32 %v1222, 4294901760
  %v1747 = vsub.f32 %v1222, %v1746
  %1748 = vmatpush1.msra.mxu0 %v1747
  %1749 = vmatprep.subr.mxu0 0.0
  %v1750 = vand.u32 %v1223, 4294901760
  %v1751 = vsub.f32 %v1223, %v1750
  %1752 = vmatpush1.msra.mxu0 %v1751
  %1753 = vmatprep.subr.mxu0 0.0
  %v1754 = vand.u32 %v1224, 4294901760
  %v1755 = vsub.f32 %v1224, %v1754
  %1756 = vmatpush1.msra.mxu0 %v1755
  %1757 = vmatprep.subr.mxu0 0.0
  %v1758 = vand.u32 %v1225, 4294901760
  %v1759 = vsub.f32 %v1225, %v1758
  %1760 = vmatpush1.msra.mxu0 %v1759
  %1761 = vmatprep.subr.mxu0 0.0
  %v1762 = vand.u32 %v1226, 4294901760
  %v1763 = vsub.f32 %v1226, %v1762
  %1764 = vmatpush1.msra.mxu0 %v1763
  %v1765 = vand.u32 %v12, 4294901760
  %v1766 = vsub.f32 %v12, %v1765
  %1767 = vmatprep.mubr.f32.mxu0 %v1766
  %v1768 = vand.u32 %v11, 4294901760
  %v1769 = vsub.f32 %v11, %v1768
  %1770 = vmatmul.mubr.f32.gmra.mrb[0].mxu0 %v1769
  %v1771 = vpop.f32.mrb[0].mxu0
  %v1772 = vadd.f32 %v1613, %v1771
  %v1773 = vpop.f32.mrb[0].mxu0
  %v1774 = vand.u32 %v14, 4294901760
  %v1775 = vsub.f32 %v14, %v1774
  %1776 = vmatprep.mubr.f32.mxu0 %v1775
  %v1777 = vand.u32 %v13, 4294901760
  %v1778 = vsub.f32 %v13, %v1777
  %1779 = vmatmul.mubr.f32.gmra.mrb[0].mxu0 %v1778
  %v1780 = vpop.f32.mrb[0].mxu0
  %v1781 = vadd.f32 %v1620, %v1780
  %v1782 = vpop.f32.mrb[0].mxu0
  %v1783 = vand.u32 %v16, 4294901760
  %v1784 = vsub.f32 %v16, %v1783
  %1785 = vmatprep.mubr.f32.mxu0 %v1784
  %v1786 = vand.u32 %v15, 4294901760
  %v1787 = vsub.f32 %v15, %v1786
  %1788 = vmatmul.mubr.f32.gmra.mrb[0].mxu0 %v1787
  %v1789 = vpop.f32.mrb[0].mxu0
  %v1790 = vadd.f32 %v1627, %v1789
  %v1791 = vpop.f32.mrb[0].mxu0
  %v1792 = vand.u32 %v18, 4294901760
  %v1793 = vsub.f32 %v18, %v1792
  %1794 = vmatprep.mubr.f32.mxu0 %v1793
  %v1795 = vand.u32 %v17, 4294901760
  %v1796 = vsub.f32 %v17, %v1795
  %1797 = vmatmul.mubr.f32.gmra.mrb[0].mxu0 %v1796
  %v1798 = vpop.f32.mrb[0].mxu0
  %v1799 = vadd.f32 %v1634, %v1798
  %v1800 = vpop.f32.mrb[0].mxu0
  %1801 = vdwg.mxu0
  %1802 = vmatprep.subr.mxu0 0.0
  %v1803 = vand.u32 %v1195, 4294901760
  %1804 = vmatpush1.msra.mxu0 %v1803
  %1805 = vmatprep.subr.mxu0 0.0
  %v1806 = vand.u32 %v1196, 4294901760
  %1807 = vmatpush1.msra.mxu0 %v1806
  %1808 = vmatprep.subr.mxu0 0.0
  %v1809 = vand.u32 %v1197, 4294901760
  %1810 = vmatpush1.msra.mxu0 %v1809
  %1811 = vmatprep.subr.mxu0 0.0
  %v1812 = vand.u32 %v1198, 4294901760
  %1813 = vmatpush1.msra.mxu0 %v1812
  %1814 = vmatprep.subr.mxu0 0.0
  %v1815 = vand.u32 %v1199, 4294901760
  %1816 = vmatpush1.msra.mxu0 %v1815
  %1817 = vmatprep.subr.mxu0 0.0
  %v1818 = vand.u32 %v1200, 4294901760
  %1819 = vmatpush1.msra.mxu0 %v1818
  %1820 = vmatprep.subr.mxu0 0.0
  %v1821 = vand.u32 %v1201, 4294901760
  %1822 = vmatpush1.msra.mxu0 %v1821
  %1823 = vmatprep.subr.mxu0 0.0
  %v1824 = vand.u32 %v1202, 4294901760
  %1825 = vmatpush1.msra.mxu0 %v1824
  %1826 = vmatprep.subr.mxu0 0.0
  %v1827 = vand.u32 %v1203, 4294901760
  %1828 = vmatpush1.msra.mxu0 %v1827
  %1829 = vmatprep.subr.mxu0 0.0
  %v1830 = vand.u32 %v1204, 4294901760
  %1831 = vmatpush1.msra.mxu0 %v1830
  %1832 = vmatprep.subr.mxu0 0.0
  %v1833 = vand.u32 %v1205, 4294901760
  %1834 = vmatpush1.msra.mxu0 %v1833
  %1835 = vmatprep.subr.mxu0 0.0
  %v1836 = vand.u32 %v1206, 4294901760
  %1837 = vmatpush1.msra.mxu0 %v1836
  %1838 = vmatprep.subr.mxu0 0.0
  %v1839 = vand.u32 %v1207, 4294901760
  %1840 = vmatpush1.msra.mxu0 %v1839
  %1841 = vmatprep.subr.mxu0 0.0
  %v1842 = vand.u32 %v1208, 4294901760
  %1843 = vmatpush1.msra.mxu0 %v1842
  %1844 = vmatprep.subr.mxu0 0.0
  %v1845 = vand.u32 %v1209, 4294901760
  %1846 = vmatpush1.msra.mxu0 %v1845
  %1847 = vmatprep.subr.mxu0 0.0
  %v1848 = vand.u32 %v1210, 4294901760
  %1849 = vmatpush1.msra.mxu0 %v1848
  %1850 = vmatprep.subr.mxu0 0.0
  %v1851 = vand.u32 %v1211, 4294901760
  %1852 = vmatpush1.msra.mxu0 %v1851
  %1853 = vmatprep.subr.mxu0 0.0
  %v1854 = vand.u32 %v1212, 4294901760
  %1855 = vmatpush1.msra.mxu0 %v1854
  %1856 = vmatprep.subr.mxu0 0.0
  %v1857 = vand.u32 %v1213, 4294901760
  %1858 = vmatpush1.msra.mxu0 %v1857
  %1859 = vmatprep.subr.mxu0 0.0
  %v1860 = vand.u32 %v1214, 4294901760
  %1861 = vmatpush1.msra.mxu0 %v1860
  %1862 = vmatprep.subr.mxu0 0.0
  %v1863 = vand.u32 %v1215, 4294901760
  %1864 = vmatpush1.msra.mxu0 %v1863
  %1865 = vmatprep.subr.mxu0 0.0
  %v1866 = vand.u32 %v1216, 4294901760
  %1867 = vmatpush1.msra.mxu0 %v1866
  %1868 = vmatprep.subr.mxu0 0.0
  %v1869 = vand.u32 %v1217, 4294901760
  %1870 = vmatpush1.msra.mxu0 %v1869
  %1871 = vmatprep.subr.mxu0 0.0
  %v1872 = vand.u32 %v1218, 4294901760
  %1873 = vmatpush1.msra.mxu0 %v1872
  %1874 = vmatprep.subr.mxu0 0.0
  %v1875 = vand.u32 %v1219, 4294901760
  %1876 = vmatpush1.msra.mxu0 %v1875
  %1877 = vmatprep.subr.mxu0 0.0
  %v1878 = vand.u32 %v1220, 4294901760
  %1879 = vmatpush1.msra.mxu0 %v1878
  %1880 = vmatprep.subr.mxu0 0.0
  %v1881 = vand.u32 %v1221, 4294901760
  %1882 = vmatpush1.msra.mxu0 %v1881
  %1883 = vmatprep.subr.mxu0 0.0
  %v1884 = vand.u32 %v1222, 4294901760
  %1885 = vmatpush1.msra.mxu0 %v1884
  %1886 = vmatprep.subr.mxu0 0.0
  %v1887 = vand.u32 %v1223, 4294901760
  %1888 = vmatpush1.msra.mxu0 %v1887
  %1889 = vmatprep.subr.mxu0 0.0
  %v1890 = vand.u32 %v1224, 4294901760
  %1891 = vmatpush1.msra.mxu0 %v1890
  %1892 = vmatprep.subr.mxu0 0.0
  %v1893 = vand.u32 %v1225, 4294901760
  %1894 = vmatpush1.msra.mxu0 %v1893
  %1895 = vmatprep.subr.mxu0 0.0
  %v1896 = vand.u32 %v1226, 4294901760
  %1897 = vmatpush1.msra.mxu0 %v1896
  %v1898 = vand.u32 %v12, 4294901760
  %v1899 = vsub.f32 %v12, %v1898
  %v1900 = vand.u32 %v1899, 4294901760
  %1901 = vmatprep.mubr.f32.mxu0 %v1900
  %v1902 = vand.u32 %v11, 4294901760
  %v1903 = vsub.f32 %v11, %v1902
  %v1904 = vand.u32 %v1903, 4294901760
  %1905 = vmatmul.mubr.f32.gmra.mrb[0].mxu0 %v1904
  %v1906 = vpop.f32.mrb[0].mxu0
  %v1907 = vadd.f32 %v1772, %v1906
  %v1908 = vpop.f32.mrb[0].mxu0
  %v1909 = vand.u32 %v14, 4294901760
  %v1910 = vsub.f32 %v14, %v1909
  %v1911 = vand.u32 %v1910, 4294901760
  %1912 = vmatprep.mubr.f32.mxu0 %v1911
  %v1913 = vand.u32 %v13, 4294901760
  %v1914 = vsub.f32 %v13, %v1913
  %v1915 = vand.u32 %v1914, 4294901760
  %1916 = vmatmul.mubr.f32.gmra.mrb[0].mxu0 %v1915
  %v1917 = vpop.f32.mrb[0].mxu0
  %v1918 = vadd.f32 %v1781, %v1917
  %v1919 = vpop.f32.mrb[0].mxu0
  %v1920 = vand.u32 %v16, 4294901760
  %v1921 = vsub.f32 %v16, %v1920
  %v1922 = vand.u32 %v1921, 4294901760
  %1923 = vmatprep.mubr.f32.mxu0 %v1922
  %v1924 = vand.u32 %v15, 4294901760
  %v1925 = vsub.f32 %v15, %v1924
  %v1926 = vand.u32 %v1925, 4294901760
  %1927 = vmatmul.mubr.f32.gmra.mrb[0].mxu0 %v1926
  %v1928 = vpop.f32.mrb[0].mxu0
  %v1929 = vadd.f32 %v1790, %v1928
  %v1930 = vpop.f32.mrb[0].mxu0
  %v1931 = vand.u32 %v18, 4294901760
  %v1932 = vsub.f32 %v18, %v1931
  %v1933 = vand.u32 %v1932, 4294901760
  %1934 = vmatprep.mubr.f32.mxu0 %v1933
  %v1935 = vand.u32 %v17, 4294901760
  %v1936 = vsub.f32 %v17, %v1935
  %v1937 = vand.u32 %v1936, 4294901760
  %1938 = vmatmul.mubr.f32.gmra.mrb[0].mxu0 %v1937
  %v1939 = vpop.f32.mrb[0].mxu0
  %v1940 = vadd.f32 %v1799, %v1939
  %v1941 = vpop.f32.mrb[0].mxu0
  %1942 = vdwg.mxu0
  %1943 = vmatprep.subr.mxu0 0.0
  %v1944 = vand.u32 %v1195, 4294901760
  %v1945 = vsub.f32 %v1195, %v1944
  %v1946 = vand.u32 %v1945, 4294901760
  %1947 = vmatpush1.msra.mxu0 %v1946
  %1948 = vmatprep.subr.mxu0 0.0
  %v1949 = vand.u32 %v1196, 4294901760
  %v1950 = vsub.f32 %v1196, %v1949
  %v1951 = vand.u32 %v1950, 4294901760
  %1952 = vmatpush1.msra.mxu0 %v1951
  %1953 = vmatprep.subr.mxu0 0.0
  %v1954 = vand.u32 %v1197, 4294901760
  %v1955 = vsub.f32 %v1197, %v1954
  %v1956 = vand.u32 %v1955, 4294901760
  %1957 = vmatpush1.msra.mxu0 %v1956
  %1958 = vmatprep.subr.mxu0 0.0
  %v1959 = vand.u32 %v1198, 4294901760
  %v1960 = vsub.f32 %v1198, %v1959
  %v1961 = vand.u32 %v1960, 4294901760
  %1962 = vmatpush1.msra.mxu0 %v1961
  %1963 = vmatprep.subr.mxu0 0.0
  %v1964 = vand.u32 %v1199, 4294901760
  %v1965 = vsub.f32 %v1199, %v1964
  %v1966 = vand.u32 %v1965, 4294901760
  %1967 = vmatpush1.msra.mxu0 %v1966
  %1968 = vmatprep.subr.mxu0 0.0
  %v1969 = vand.u32 %v1200, 4294901760
  %v1970 = vsub.f32 %v1200, %v1969
  %v1971 = vand.u32 %v1970, 4294901760
  %1972 = vmatpush1.msra.mxu0 %v1971
  %1973 = vmatprep.subr.mxu0 0.0
  %v1974 = vand.u32 %v1201, 4294901760
  %v1975 = vsub.f32 %v1201, %v1974
  %v1976 = vand.u32 %v1975, 4294901760
  %1977 = vmatpush1.msra.mxu0 %v1976
  %1978 = vmatprep.subr.mxu0 0.0
  %v1979 = vand.u32 %v1202, 4294901760
  %v1980 = vsub.f32 %v1202, %v1979
  %v1981 = vand.u32 %v1980, 4294901760
  %1982 = vmatpush1.msra.mxu0 %v1981
  %1983 = vmatprep.subr.mxu0 0.0
  %v1984 = vand.u32 %v1203, 4294901760
  %v1985 = vsub.f32 %v1203, %v1984
  %v1986 = vand.u32 %v1985, 4294901760
  %1987 = vmatpush1.msra.mxu0 %v1986
  %1988 = vmatprep.subr.mxu0 0.0
  %v1989 = vand.u32 %v1204, 4294901760
  %v1990 = vsub.f32 %v1204, %v1989
  %v1991 = vand.u32 %v1990, 4294901760
  %1992 = vmatpush1.msra.mxu0 %v1991
  %1993 = vmatprep.subr.mxu0 0.0
  %v1994 = vand.u32 %v1205, 4294901760
  %v1995 = vsub.f32 %v1205, %v1994
  %v1996 = vand.u32 %v1995, 4294901760
  %1997 = vmatpush1.msra.mxu0 %v1996
  %1998 = vmatprep.subr.mxu0 0.0
  %v1999 = vand.u32 %v1206, 4294901760
  %v2000 = vsub.f32 %v1206, %v1999
  %v2001 = vand.u32 %v2000, 4294901760
  %2002 = vmatpush1.msra.mxu0 %v2001
  %2003 = vmatprep.subr.mxu0 0.0
  %v2004 = vand.u32 %v1207, 4294901760
  %v2005 = vsub.f32 %v1207, %v2004
  %v2006 = vand.u32 %v2005, 4294901760
  %2007 = vmatpush1.msra.mxu0 %v2006
  %2008 = vmatprep.subr.mxu0 0.0
  %v2009 = vand.u32 %v1208, 4294901760
  %v2010 = vsub.f32 %v1208, %v2009
  %v2011 = vand.u32 %v2010, 4294901760
  %2012 = vmatpush1.msra.mxu0 %v2011
  %2013 = vmatprep.subr.mxu0 0.0
  %v2014 = vand.u32 %v1209, 4294901760
  %v2015 = vsub.f32 %v1209, %v2014
  %v2016 = vand.u32 %v2015, 4294901760
  %2017 = vmatpush1.msra.mxu0 %v2016
  %2018 = vmatprep.subr.mxu0 0.0
  %v2019 = vand.u32 %v1210, 4294901760
  %v2020 = vsub.f32 %v1210, %v2019
  %v2021 = vand.u32 %v2020, 4294901760
  %2022 = vmatpush1.msra.mxu0 %v2021
  %2023 = vmatprep.subr.mxu0 0.0
  %v2024 = vand.u32 %v1211, 4294901760
  %v2025 = vsub.f32 %v1211, %v2024
  %v2026 = vand.u32 %v2025, 4294901760
  %2027 = vmatpush1.msra.mxu0 %v2026
  %2028 = vmatprep.subr.mxu0 0.0
  %v2029 = vand.u32 %v1212, 4294901760
  %v2030 = vsub.f32 %v1212, %v2029
  %v2031 = vand.u32 %v2030, 4294901760
  %2032 = vmatpush1.msra.mxu0 %v2031
  %2033 = vmatprep.subr.mxu0 0.0
  %v2034 = vand.u32 %v1213, 4294901760
  %v2035 = vsub.f32 %v1213, %v2034
  %v2036 = vand.u32 %v2035, 4294901760
  %2037 = vmatpush1.msra.mxu0 %v2036
  %2038 = vmatprep.subr.mxu0 0.0
  %v2039 = vand.u32 %v1214, 4294901760
  %v2040 = vsub.f32 %v1214, %v2039
  %v2041 = vand.u32 %v2040, 4294901760
  %2042 = vmatpush1.msra.mxu0 %v2041
  %2043 = vmatprep.subr.mxu0 0.0
  %v2044 = vand.u32 %v1215, 4294901760
  %v2045 = vsub.f32 %v1215, %v2044
  %v2046 = vand.u32 %v2045, 4294901760
  %2047 = vmatpush1.msra.mxu0 %v2046
  %2048 = vmatprep.subr.mxu0 0.0
  %v2049 = vand.u32 %v1216, 4294901760
  %v2050 = vsub.f32 %v1216, %v2049
  %v2051 = vand.u32 %v2050, 4294901760
  %2052 = vmatpush1.msra.mxu0 %v2051
  %2053 = vmatprep.subr.mxu0 0.0
  %v2054 = vand.u32 %v1217, 4294901760
  %v2055 = vsub.f32 %v1217, %v2054
  %v2056 = vand.u32 %v2055, 4294901760
  %2057 = vmatpush1.msra.mxu0 %v2056
  %2058 = vmatprep.subr.mxu0 0.0
  %v2059 = vand.u32 %v1218, 4294901760
  %v2060 = vsub.f32 %v1218, %v2059
  %v2061 = vand.u32 %v2060, 4294901760
  %2062 = vmatpush1.msra.mxu0 %v2061
  %2063 = vmatprep.subr.mxu0 0.0
  %v2064 = vand.u32 %v1219, 4294901760
  %v2065 = vsub.f32 %v1219, %v2064
  %v2066 = vand.u32 %v2065, 4294901760
  %2067 = vmatpush1.msra.mxu0 %v2066
  %2068 = vmatprep.subr.mxu0 0.0
  %v2069 = vand.u32 %v1220, 4294901760
  %v2070 = vsub.f32 %v1220, %v2069
  %v2071 = vand.u32 %v2070, 4294901760
  %2072 = vmatpush1.msra.mxu0 %v2071
  %2073 = vmatprep.subr.mxu0 0.0
  %v2074 = vand.u32 %v1221, 4294901760
  %v2075 = vsub.f32 %v1221, %v2074
  %v2076 = vand.u32 %v2075, 4294901760
  %2077 = vmatpush1.msra.mxu0 %v2076
  %2078 = vmatprep.subr.mxu0 0.0
  %v2079 = vand.u32 %v1222, 4294901760
  %v2080 = vsub.f32 %v1222, %v2079
  %v2081 = vand.u32 %v2080, 4294901760
  %2082 = vmatpush1.msra.mxu0 %v2081
  %2083 = vmatprep.subr.mxu0 0.0
  %v2084 = vand.u32 %v1223, 4294901760
  %v2085 = vsub.f32 %v1223, %v2084
  %v2086 = vand.u32 %v2085, 4294901760
  %2087 = vmatpush1.msra.mxu0 %v2086
  %2088 = vmatprep.subr.mxu0 0.0
  %v2089 = vand.u32 %v1224, 4294901760
  %v2090 = vsub.f32 %v1224, %v2089
  %v2091 = vand.u32 %v2090, 4294901760
  %2092 = vmatpush1.msra.mxu0 %v2091
  %2093 = vmatprep.subr.mxu0 0.0
  %v2094 = vand.u32 %v1225, 4294901760
  %v2095 = vsub.f32 %v1225, %v2094
  %v2096 = vand.u32 %v2095, 4294901760
  %2097 = vmatpush1.msra.mxu0 %v2096
  %2098 = vmatprep.subr.mxu0 0.0
  %v2099 = vand.u32 %v1226, 4294901760
  %v2100 = vsub.f32 %v1226, %v2099
  %v2101 = vand.u32 %v2100, 4294901760
  %2102 = vmatpush1.msra.mxu0 %v2101
  %v2103 = vand.u32 %v12, 4294901760
  %2104 = vmatprep.mubr.f32.mxu0 %v2103
  %v2105 = vand.u32 %v11, 4294901760
  %2106 = vmatmul.mubr.f32.gmra.mrb[0].mxu0 %v2105
  %v2107 = vpop.f32.mrb[0].mxu0
  %v2108 = vadd.f32 %v1907, %v2107
  %v2109 = vpop.f32.mrb[0].mxu0
  %v2110 = vand.u32 %v14, 4294901760
  %2111 = vmatprep.mubr.f32.mxu0 %v2110
  %v2112 = vand.u32 %v13, 4294901760
  %2113 = vmatmul.mubr.f32.gmra.mrb[0].mxu0 %v2112
  %v2114 = vpop.f32.mrb[0].mxu0
  %v2115 = vadd.f32 %v1918, %v2114
  %v2116 = vpop.f32.mrb[0].mxu0
  %v2117 = vand.u32 %v16, 4294901760
  %2118 = vmatprep.mubr.f32.mxu0 %v2117
  %v2119 = vand.u32 %v15, 4294901760
  %2120 = vmatmul.mubr.f32.gmra.mrb[0].mxu0 %v2119
  %v2121 = vpop.f32.mrb[0].mxu0
  %v2122 = vadd.f32 %v1929, %v2121
  %v2123 = vpop.f32.mrb[0].mxu0
  %v2124 = vand.u32 %v18, 4294901760
  %2125 = vmatprep.mubr.f32.mxu0 %v2124
  %v2126 = vand.u32 %v17, 4294901760
  %2127 = vmatmul.mubr.f32.gmra.mrb[0].mxu0 %v2126
  %v2128 = vpop.f32.mrb[0].mxu0
  %v2129 = vadd.f32 %v1940, %v2128
  %v2130 = vpop.f32.mrb[0].mxu0
  %2131 = vdwg.mxu0
  %2132 = vmatprep.subr.mxu0 0.0
  %v2133 = vand.u32 %v1195, 4294901760
  %2134 = vmatpush1.msra.mxu0 %v2133
  %2135 = vmatprep.subr.mxu0 0.0
  %v2136 = vand.u32 %v1196, 4294901760
  %2137 = vmatpush1.msra.mxu0 %v2136
  %2138 = vmatprep.subr.mxu0 0.0
  %v2139 = vand.u32 %v1197, 4294901760
  %2140 = vmatpush1.msra.mxu0 %v2139
  %2141 = vmatprep.subr.mxu0 0.0
  %v2142 = vand.u32 %v1198, 4294901760
  %2143 = vmatpush1.msra.mxu0 %v2142
  %2144 = vmatprep.subr.mxu0 0.0
  %v2145 = vand.u32 %v1199, 4294901760
  %2146 = vmatpush1.msra.mxu0 %v2145
  %2147 = vmatprep.subr.mxu0 0.0
  %v2148 = vand.u32 %v1200, 4294901760
  %2149 = vmatpush1.msra.mxu0 %v2148
  %2150 = vmatprep.subr.mxu0 0.0
  %v2151 = vand.u32 %v1201, 4294901760
  %2152 = vmatpush1.msra.mxu0 %v2151
  %2153 = vmatprep.subr.mxu0 0.0
  %v2154 = vand.u32 %v1202, 4294901760
  %2155 = vmatpush1.msra.mxu0 %v2154
  %2156 = vmatprep.subr.mxu0 0.0
  %v2157 = vand.u32 %v1203, 4294901760
  %2158 = vmatpush1.msra.mxu0 %v2157
  %2159 = vmatprep.subr.mxu0 0.0
  %v2160 = vand.u32 %v1204, 4294901760
  %2161 = vmatpush1.msra.mxu0 %v2160
  %2162 = vmatprep.subr.mxu0 0.0
  %v2163 = vand.u32 %v1205, 4294901760
  %2164 = vmatpush1.msra.mxu0 %v2163
  %2165 = vmatprep.subr.mxu0 0.0
  %v2166 = vand.u32 %v1206, 4294901760
  %2167 = vmatpush1.msra.mxu0 %v2166
  %2168 = vmatprep.subr.mxu0 0.0
  %v2169 = vand.u32 %v1207, 4294901760
  %2170 = vmatpush1.msra.mxu0 %v2169
  %2171 = vmatprep.subr.mxu0 0.0
  %v2172 = vand.u32 %v1208, 4294901760
  %2173 = vmatpush1.msra.mxu0 %v2172
  %2174 = vmatprep.subr.mxu0 0.0
  %v2175 = vand.u32 %v1209, 4294901760
  %2176 = vmatpush1.msra.mxu0 %v2175
  %2177 = vmatprep.subr.mxu0 0.0
  %v2178 = vand.u32 %v1210, 4294901760
  %2179 = vmatpush1.msra.mxu0 %v2178
  %2180 = vmatprep.subr.mxu0 0.0
  %v2181 = vand.u32 %v1211, 4294901760
  %2182 = vmatpush1.msra.mxu0 %v2181
  %2183 = vmatprep.subr.mxu0 0.0
  %v2184 = vand.u32 %v1212, 4294901760
  %2185 = vmatpush1.msra.mxu0 %v2184
  %2186 = vmatprep.subr.mxu0 0.0
  %v2187 = vand.u32 %v1213, 4294901760
  %2188 = vmatpush1.msra.mxu0 %v2187
  %2189 = vmatprep.subr.mxu0 0.0
  %v2190 = vand.u32 %v1214, 4294901760
  %2191 = vmatpush1.msra.mxu0 %v2190
  %2192 = vmatprep.subr.mxu0 0.0
  %v2193 = vand.u32 %v1215, 4294901760
  %2194 = vmatpush1.msra.mxu0 %v2193
  %2195 = vmatprep.subr.mxu0 0.0
  %v2196 = vand.u32 %v1216, 4294901760
  %2197 = vmatpush1.msra.mxu0 %v2196
  %2198 = vmatprep.subr.mxu0 0.0
  %v2199 = vand.u32 %v1217, 4294901760
  %2200 = vmatpush1.msra.mxu0 %v2199
  %2201 = vmatprep.subr.mxu0 0.0
  %v2202 = vand.u32 %v1218, 4294901760
  %2203 = vmatpush1.msra.mxu0 %v2202
  %2204 = vmatprep.subr.mxu0 0.0
  %v2205 = vand.u32 %v1219, 4294901760
  %2206 = vmatpush1.msra.mxu0 %v2205
  %2207 = vmatprep.subr.mxu0 0.0
  %v2208 = vand.u32 %v1220, 4294901760
  %2209 = vmatpush1.msra.mxu0 %v2208
  %2210 = vmatprep.subr.mxu0 0.0
  %v2211 = vand.u32 %v1221, 4294901760
  %2212 = vmatpush1.msra.mxu0 %v2211
  %2213 = vmatprep.subr.mxu0 0.0
  %v2214 = vand.u32 %v1222, 4294901760
  %2215 = vmatpush1.msra.mxu0 %v2214
  %2216 = vmatprep.subr.mxu0 0.0
  %v2217 = vand.u32 %v1223, 4294901760
  %2218 = vmatpush1.msra.mxu0 %v2217
  %2219 = vmatprep.subr.mxu0 0.0
  %v2220 = vand.u32 %v1224, 4294901760
  %2221 = vmatpush1.msra.mxu0 %v2220
  %2222 = vmatprep.subr.mxu0 0.0
  %v2223 = vand.u32 %v1225, 4294901760
  %2224 = vmatpush1.msra.mxu0 %v2223
  %2225 = vmatprep.subr.mxu0 0.0
  %v2226 = vand.u32 %v1226, 4294901760
  %2227 = vmatpush1.msra.mxu0 %v2226
  %v2228 = vand.u32 %v12, 4294901760
  %2229 = vmatprep.mubr.f32.mxu0 %v2228
  %v2230 = vand.u32 %v11, 4294901760
  %2231 = vmatmul.mubr.f32.gmra.mrb[0].mxu0 %v2230
  %v2232 = vpop.f32.mrb[0].mxu0
  %v2233 = vadd.f32 %v2108, %v2232
  %v2234 = vpop.f32.mrb[0].mxu0
  %v2235 = vand.u32 %v14, 4294901760
  %2236 = vmatprep.mubr.f32.mxu0 %v2235
  %v2237 = vand.u32 %v13, 4294901760
  %2238 = vmatmul.mubr.f32.gmra.mrb[0].mxu0 %v2237
  %v2239 = vpop.f32.mrb[0].mxu0
  %v2240 = vadd.f32 %v2115, %v2239
  %v2241 = vpop.f32.mrb[0].mxu0
  %v2242 = vand.u32 %v16, 4294901760
  %2243 = vmatprep.mubr.f32.mxu0 %v2242
  %v2244 = vand.u32 %v15, 4294901760
  %2245 = vmatmul.mubr.f32.gmra.mrb[0].mxu0 %v2244
  %v2246 = vpop.f32.mrb[0].mxu0
  %v2247 = vadd.f32 %v2122, %v2246
  %v2248 = vpop.f32.mrb[0].mxu0
  %v2249 = vand.u32 %v18, 4294901760
  %2250 = vmatprep.mubr.f32.mxu0 %v2249
  %v2251 = vand.u32 %v17, 4294901760
  %2252 = vmatmul.mubr.f32.gmra.mrb[0].mxu0 %v2251
  %v2253 = vpop.f32.mrb[0].mxu0
  %v2254 = vadd.f32 %v2129, %v2253
  %v2255 = vpop.f32.mrb[0].mxu0
  %2256 = vdwg.mxu0
  %2258 = vrot.lane.b32.xlu0 %v2233, 9
  %v2259 = vpop.permute.xlu0 %2258
  %v2261 = vsel %vm1099, 0.0, %v2259
  %v2262 = vsel %vm1106, %v2261, 0.0
  %v2263 = vadd.f32 %v2262, 0.0
  %v2264 = vrot.slane %v2233, 3
  %2265 = vrot.lane.b32.xlu0 %v2264, 8
  %v2266 = vpop.permute.xlu0 %2265
  %v2268 = vsel %vm1113, 0.0, %v2266
  %v2269 = vadd.f32 %v2263, %v2268
  %v2271 = vrot.slane %v2233, 6
  %v2272 = vrot.slane %v2240, 6
  %v2273 = vsel %vm1117, %v2271, %v2272
  %2274 = vrot.lane.b32.xlu0 %v2273, 7
  %v2275 = vpop.permute.xlu0 %2274
  %v2277 = vsel %vm1124, 0.0, %v2275
  %v2278 = vsel %vm1131, %v2277, 0.0
  %v2279 = vadd.f32 %v2269, %v2278
  %v2280 = vrot.slane %v2240, 1
  %2281 = vrot.lane.b32.xlu0 %v2280, 1
  %v2282 = vpop.permute.xlu0 %2281
  %v2284 = vsel %vm1138, 0.0, %v2282
  %v2285 = vsel %vm1106, %v2284, 0.0
  %v2286 = vadd.f32 %v2279, %v2285
  %v2287 = vrot.slane %v2240, 4
  %v2289 = vadd.f32 %v2286, %v2287
  %2291 = vrot.lane.b32.xlu0 %v2240, 127
  %v2292 = vpop.permute.xlu0 %2291
  %2293 = vrot.lane.b32.xlu0 %v2247, 127
  %v2294 = vpop.permute.xlu0 %2293
  %v2297 = vsel %vm1152, %v2292, 0.0
  %v2298 = vsel %vm1152, %v2294, 0.0
  %v2299 = vsel %vm1131, %v2297, 0.0
  %v2300 = vsel %vm1131, %v2298, 0.0
  %v2303 = vrot.slane %v2299, 7
  %v2304 = vrot.slane %v2300, 7
  %v2305 = vsel %vm1159, %v2303, %v2304
  %v2307 = vadd.f32 %v2289, %v2305
  %2308 = vrot.lane.b32.xlu0 %v2247, 121
  %v2309 = vpop.permute.xlu0 %2308
  %v2311 = vsel %vm1168, %v2309, 0.0
  %v2312 = vsel %vm1106, %v2311, 0.0
  %v2314 = vrot.slane %v2312, 2
  %v2316 = vadd.f32 %v2307, %v2314
  %2317 = vrot.lane.b32.xlu0 %v2247, 120
  %v2318 = vpop.permute.xlu0 %2317
  %v2320 = vsel %vm1178, %v2318, 0.0
  %v2322 = vrot.slane %v2320, 5
  %v2324 = vadd.f32 %v2316, %v2322
  %2326 = vrot.lane.b32.xlu0 %v2254, 119
  %v2327 = vpop.permute.xlu0 %2326
  %v2329 = vsel %vm1188, %v2327, 0.0
  %v2330 = vsel %vm1131, %v2329, 0.0
  %v2331 = vadd.f32 %v2324, %v2330
  %s2332 = scalar_lea.vmem %s2, 4
  %2333 = vst.msk [vmem:[%s2332] sm:$0x7] %vm1192, %v2331
  // Predicated region
  $region10: #{shrinkage_channels_forward.1} parent=0 // pred_check
    _
  $region11: #{shrinkage_channels_forward.1} parent=0 // pred_check_branch
    %2335 = sbr.rel (0) target = $region13
  $region12: #{shrinkage_channels_forward.1} parent=0 // pred_region
    _
  $region13: #{shrinkage_channels_forward.1} parent=0 // pred_fallthru
    _
  // Predicated region
  $region14: #{shrinkage_channels_forward.1} parent=0 // pred_check
    _
  $region15: #{shrinkage_channels_forward.1} parent=0 // pred_check_branch
    %2337 = sbr.rel (0) target = $region17
  $region16: #{shrinkage_channels_forward.1} parent=0 // pred_region
    _
  $region17: #{shrinkage_channels_forward.1} parent=0 // pred_fallthru
    _

</llo_original>
